<compile_context>
chip_gen: v7x
topology: tpu7x:2x2x1
jax: 0.10.0
libtpu: 0.0.40
codegen_flags: <defaults>
</compile_context>

<pallas_src>
import math
import functools

import jax
import jax.numpy as jnp
from jax import lax
from jax.experimental import pallas as pl
from jax.experimental.pallas import tpu as pltpu


# --------------------------------------------------------------------------------------
# helpers
# --------------------------------------------------------------------------------------
def _layer_norm(x, gamma, beta, eps=1e-5):
    mu = jnp.mean(x, axis=-1, keepdims=True)
    var = jnp.mean((x - mu) ** 2, axis=-1, keepdims=True)
    return (x - mu) * lax.rsqrt(var + eps) * gamma + beta


def _pick_batch_tile(bs, seq_len):
    # Flatten enough batch into the matmul M dimension to approach an MXU tile
    # (~128-256 rows) while keeping the tile a divisor of bs.
    target = max(1, 256 // max(seq_len, 1))
    bt = 1
    for cand in range(1, bs + 1):
        if bs % cand == 0 and cand <= target:
            bt = cand
    return bt


# --------------------------------------------------------------------------------------
# fused Pallas kernel: all transformer blocks; batch tile on grid axis 0 ("parallel"),
# block index on grid axis 1 ("arbitrary"); activations resident in VMEM scratch.
# --------------------------------------------------------------------------------------
def fused_architecture_kernel(
    x_ref, y_ref,
    wk_ref, bk_ref, wv_ref, bv_ref, wo_ref, bo_ref,
    ln1g_ref, ln1b_ref,
    w1_ref, b1_ref, w2_ref, b2_ref,
    ln2g_ref, ln2b_ref,
    out_ref,
    x_scr, y_scr,
    *, n_heads,
):
    l = pl.program_id(1)
    n_blocks = pl.num_programs(1)

    Bt, S, D = x_ref.shape
    d_k = D // n_heads
    M = Bt * S

    # block 0: load the (q_embed + pos) activation and cache the bf16 value stream
    @pl.when(l == 0)
    def _():
        x_scr[...] = x_ref[...]                          # f32 resident activation
        y_scr[...] = y_ref[...].astype(jnp.bfloat16)     # bf16 value-stream (constant)

    x = x_scr[...].reshape(M, D)                         # f32
    y_bf = y_scr[...].reshape(M, D)                      # bf16

    # ---- projections (kq_same=1: q == k, computed once; bf16 MXU, f32 accumulate) ----
    wk = wk_ref[0]                                       # (D, D) bf16, (in, out) layout
    wv = wv_ref[0]
    wo = wo_ref[0]
    x_bf = x.astype(jnp.bfloat16)
    kq = jnp.dot(x_bf, wk, preferred_element_type=jnp.float32) + bk_ref[0]
    v = jnp.dot(y_bf, wv, preferred_element_type=jnp.float32) + bv_ref[0]
    kq_bf = kq.astype(jnp.bfloat16)
    v_bf = v.astype(jnp.bfloat16)

    # masks (hoisted out of the batch/head loops): mask=0 -> strictly-past positions
    row = lax.broadcasted_iota(jnp.int32, (S, S), 0)
    col = lax.broadcasted_iota(jnp.int32, (S, S), 1)
    valid = col < row
    row0 = lax.broadcasted_iota(jnp.int32, (S, 1), 0) == 0      # zero_pad mask
    scale = 1.0 / math.sqrt(d_k)

    outs = []
    for b in range(Bt):                  # static loop over batch elements in the tile
        r0 = b * S
        kq_b = kq_bf[r0:r0 + S, :]       # (S, D) bf16
        v_b = v_bf[r0:r0 + S, :]
        acc_b = jnp.zeros((S, D), jnp.float32)
        for h in range(n_heads):         # static loop over heads
            c0 = h * d_k
            q_h = kq_b[:, c0:c0 + d_k]
            # scores = q_h @ k_h.T without materializing a transpose (N-T dot)
            s = lax.dot_general(q_h, q_h, (((1,), (1,)), ((), ())),
                                preferred_element_type=jnp.float32) * scale
            s = jnp.where(valid, s, -1e32)
            s = s - jnp.max(s, axis=-1, keepdims=True)
            p = jnp.exp(s)
            p = p * pl.reciprocal(jnp.sum(p, axis=-1, keepdims=True), approx=True)
            o_h = jnp.dot(p.astype(jnp.bfloat16), v_b[:, c0:c0 + d_k],
                          preferred_element_type=jnp.float32)             # (S, d_k)
            # fold the output projection per head -> no head concat / relayout
            acc_b = acc_b + jnp.dot(o_h.astype(jnp.bfloat16), wo[c0:c0 + d_k, :],
                                    preferred_element_type=jnp.float32)   # (S, D)
        # zero_pad=True: attention output of query row 0 is zero (bias added below)
        acc_b = jnp.where(row0, 0.0, acc_b)
        outs.append(acc_b)
    attn = (outs[0] if Bt == 1 else jnp.concatenate(outs, axis=0)) + bo_ref[0]

    # ---- residual + layer norm 1 (f32) ----
    x1 = _layer_norm(x + attn, ln1g_ref[0], ln1b_ref[0])

    # ---- position-wise feed forward (apply_pos=True), bf16 MXU / f32 accumulate ----
    h1 = jnp.maximum(
        jnp.dot(x1.astype(jnp.bfloat16), w1_ref[0],
                preferred_element_type=jnp.float32) + b1_ref[0], 0.0)
    h2 = jnp.dot(h1.astype(jnp.bfloat16), w2_ref[0],
                 preferred_element_type=jnp.float32) + b2_ref[0]

    # ---- residual + layer norm 2 (f32) ----
    x2 = _layer_norm(x1 + h2, ln2g_ref[0], ln2b_ref[0])

    x_scr[...] = x2.reshape(Bt, S, D)                    # stays resident for block l+1

    @pl.when(l == n_blocks - 1)
    def _():
        out_ref[...] = x2.reshape(Bt, S, D).astype(out_ref.dtype)


def architecture_forward(q_embed, qa_embed, packed, pos_emb, *, n_heads, batch_tile=None):
    bs, S, D = q_embed.shape
    n_blocks = packed["wk_t"].shape[0]
    d_ff = packed["w1_t"].shape[2]
    if batch_tile is None:
        batch_tile = _pick_batch_tile(bs, S)
    assert bs % batch_tile == 0
    Bt = batch_tile
    num_bt = bs // Bt

    pe = pos_emb[None, :S, :]
    x = (q_embed + pe).astype(jnp.float32)
    y = (qa_embed + pe).astype(jnp.float32)

    # stacked per-block params, in kernel-argument order
    weight_layout = [
        ("wk_t", (1, D, D)), ("bk", (1, 1, D)),
        ("wv_t", (1, D, D)), ("bv", (1, 1, D)),
        ("wo_t", (1, D, D)), ("bo", (1, 1, D)),
        ("ln1_g", (1, 1, D)), ("ln1_b", (1, 1, D)),
        ("w1_t", (1, D, d_ff)), ("b1", (1, 1, d_ff)),
        ("w2_t", (1, d_ff, D)), ("b2", (1, 1, D)),
        ("ln2_g", (1, 1, D)), ("ln2_b", (1, 1, D)),
    ]

    def _act_map(bt, l):
        return (bt, 0, 0)

    def _w_map(bt, l):
        return (l, 0, 0)

    in_specs = [
        pl.BlockSpec((Bt, S, D), _act_map),   # x  (read at block 0, then resident)
        pl.BlockSpec((Bt, S, D), _act_map),   # y  (value stream, cached bf16)
    ] + [pl.BlockSpec(shape, _w_map) for _, shape in weight_layout]

    kernel = functools.partial(fused_architecture_kernel, n_heads=n_heads)

    return pl.pallas_call(
        kernel,
        out_shape=jax.ShapeDtypeStruct((bs, S, D), jnp.float32),
        grid_spec=pltpu.PrefetchScalarGridSpec(
            num_scalar_prefetch=0,
            grid=(num_bt, n_blocks),
            in_specs=in_specs,
            out_specs=pl.BlockSpec((Bt, S, D), _act_map),
            scratch_shapes=[
                pltpu.VMEM((Bt, S, D), jnp.float32),     # resident activation
                pltpu.VMEM((Bt, S, D), jnp.bfloat16),    # cached bf16 value stream
            ],
        ),
        compiler_params=pltpu.CompilerParams(
            dimension_semantics=("parallel", "arbitrary"),
            vmem_limit_bytes=64 * 1024 * 1024,
        ),
    )(x, y, *[packed[name] for name, _ in weight_layout])


# --------------------------------------------------------------------------------------
# Parameter construction (deterministic, synthetic) + host-side packing
# --------------------------------------------------------------------------------------
def make_pos_emb(seq_len, d_model):
    # CosinePositionalEmbedding: random init fully overwritten by sin/cos (even d_model)
    pos = jnp.arange(seq_len, dtype=jnp.float32)[:, None]
    div = jnp.exp(jnp.arange(0, d_model, 2, dtype=jnp.float32)
                  * (-math.log(10000.0) / d_model))
    pe = jnp.zeros((seq_len, d_model), jnp.float32)
    pe = pe.at[:, 0::2].set(jnp.sin(pos * div))
    pe = pe.at[:, 1::2].set(jnp.cos(pos * div))
    return pe


def init_block_params(key, d_model, d_ff):
    # PyTorch-layout weights: (out_features, in_features)
    ks = jax.random.split(key, 4)
    scale = 0.05
    return {
        "wk": jax.random.normal(ks[0], (d_model, d_model), jnp.float32) * scale,
        "bk": jnp.zeros((d_model,), jnp.float32),
        "wv": jax.random.normal(ks[1], (d_model, d_model), jnp.float32) * scale,
        "bv": jnp.zeros((d_model,), jnp.float32),
        "wo": jax.random.normal(ks[2], (d_model, d_model), jnp.float32) * scale,
        "bo": jnp.zeros((d_model,), jnp.float32),
        "ln1_g": jnp.ones((d_model,), jnp.float32),
        "ln1_b": jnp.zeros((d_model,), jnp.float32),
        "w1": jax.random.normal(ks[3], (d_ff, d_model), jnp.float32) * scale,
        "b1": jnp.zeros((d_ff,), jnp.float32),
        "w2": jax.random.normal(jax.random.fold_in(ks[3], 1),
                                (d_model, d_ff), jnp.float32) * scale,
        "b2": jnp.zeros((d_model,), jnp.float32),
        "ln2_g": jnp.ones((d_model,), jnp.float32),
        "ln2_b": jnp.zeros((d_model,), jnp.float32),
    }


def pack_params(blocks, compute_dtype=jnp.bfloat16):
    # Stack per-block params along a leading n_blocks axis; pre-transpose matmul weights
    # to (in, out) and cast them to the MXU compute dtype. Biases / LN params stay f32.
    n_blocks = len(blocks)
    d_model = blocks[0]["wk"].shape[0]
    d_ff = blocks[0]["w1"].shape[0]

    def stack(name):
        return jnp.stack([p[name] for p in blocks], axis=0)

    return {
        "wk_t": stack("wk").transpose(0, 2, 1).astype(compute_dtype),
        "wv_t": stack("wv").transpose(0, 2, 1).astype(compute_dtype),
        "wo_t": stack("wo").transpose(0, 2, 1).astype(compute_dtype),
        "w1_t": stack("w1").transpose(0, 2, 1).astype(compute_dtype),
        "w2_t": stack("w2").transpose(0, 2, 1).astype(compute_dtype),
        "bk": stack("bk").reshape(n_blocks, 1, d_model),
        "bv": stack("bv").reshape(n_blocks, 1, d_model),
        "bo": stack("bo").reshape(n_blocks, 1, d_model),
        "b1": stack("b1").reshape(n_blocks, 1, d_ff),
        "b2": stack("b2").reshape(n_blocks, 1, d_model),
        "ln1_g": stack("ln1_g").reshape(n_blocks, 1, d_model),
        "ln1_b": stack("ln1_b").reshape(n_blocks, 1, d_model),
        "ln2_g": stack("ln2_g").reshape(n_blocks, 1, d_model),
        "ln2_b": stack("ln2_b").reshape(n_blocks, 1, d_model),
    }


# --------------------------------------------------------------------------------------
# Pure-JAX reference with the same bf16 matmul / f32 everything-else numerics
# --------------------------------------------------------------------------------------
def architecture_forward_ref(q_embed, qa_embed, packed, pos_emb, *, n_heads):
    bs, S, D = q_embed.shape
    d_k = D // n_heads
    n_blocks = packed["wk_t"].shape[0]
    pe = pos_emb[None, :S, :]
    x = (q_embed + pe).astype(jnp.float32)
    y = (qa_embed + pe).astype(jnp.float32)

    row = jnp.arange(S)[:, None]
    col = jnp.arange(S)[None, :]
    valid = (col < row)[None, None]

    for l in range(n_blocks):
        wk, bk = packed["wk_t"][l], packed["bk"][l]
        wv, bv = packed["wv_t"][l], packed["bv"][l]
        wo, bo = packed["wo_t"][l], packed["bo"][l]

        kq = jnp.dot(x.astype(jnp.bfloat16), wk, preferred_element_type=jnp.float32) + bk
        v = jnp.dot(y.astype(jnp.bfloat16), wv, preferred_element_type=jnp.float32) + bv

        def split(t):
            return t.reshape(bs, S, n_heads, d_k).transpose(0, 2, 1, 3)

        qh, kh, vh = split(kq), split(kq), split(v)
        s = jnp.einsum("bhqd,bhkd->bhqk",
                       qh.astype(jnp.bfloat16), kh.astype(jnp.bfloat16),
                       preferred_element_type=jnp.float32) / math.sqrt(d_k)
        s = jnp.where(valid, s, -1e32)
        p = jax.nn.softmax(s, axis=-1)
        p = jnp.where((row == 0)[None, None], 0.0, p)
        o = jnp.einsum("bhqk,bhkd->bhqd",
                       p.astype(jnp.bfloat16), vh.astype(jnp.bfloat16),
                       preferred_element_type=jnp.float32)
        o = o.transpose(0, 2, 1, 3).reshape(bs, S, D)
        attn = jnp.dot(o.astype(jnp.bfloat16), wo, preferred_element_type=jnp.float32) + bo

        x = _layer_norm(x + attn, packed["ln1_g"][l], packed["ln1_b"][l])
        h1 = jnp.maximum(
            jnp.dot(x.astype(jnp.bfloat16), packed["w1_t"][l],
                    preferred_element_type=jnp.float32) + packed["b1"][l], 0.0)
        h2 = jnp.dot(h1.astype(jnp.bfloat16), packed["w2_t"][l],
                     preferred_element_type=jnp.float32) + packed["b2"][l]
        x = _layer_norm(x + h2, packed["ln2_g"][l], packed["ln2_b"][l])
    return x


# --------------------------------------------------------------------------------------
if __name__ == "__main__":
    bs, seq, d_model, d_ff, n_heads, n_blocks, max_len = 2, 8, 32, 64, 2, 2, 16

    key = jax.random.PRNGKey(0)
    k_q, k_qa, k_p = jax.random.split(key, 3)
    q_embed_data = jax.random.normal(k_q, (bs, seq, d_model), jnp.float32)
    qa_embed_data = jax.random.normal(k_qa, (bs, seq, d_model), jnp.float32)

    pos_emb = make_pos_emb(max_len, d_model)
    blocks = [init_block_params(jax.random.fold_in(k_p, i), d_model, d_ff)
              for i in range(n_blocks)]
    packed = pack_params(blocks)

    out = architecture_forward(q_embed_data, qa_embed_data, packed, pos_emb,
                               n_heads=n_heads)
    out = jax.block_until_ready(out)

    ref = architecture_forward_ref(q_embed_data, qa_embed_data, packed, pos_emb,
                                   n_heads=n_heads)
    assert out.shape == (bs, seq, d_model)
    # bf16 matmul inputs + approx reciprocal + different accumulation order -> loose tol
    assert jnp.allclose(out, ref, rtol=2e-2, atol=2e-2), "mismatch vs pure-JAX reference"

    print("KERNEL_OK")
</pallas_src>

<mosaic_0001>
module attributes {stable_mosaic.version = 11 : i64} {
  func.func @fused_architecture_kernel(%arg0: i32, %arg1: i32, %arg2: memref<2x8x32xf32, #tpu.memory_space<vmem>>, %arg3: memref<2x8x32xf32, #tpu.memory_space<vmem>>, %arg4: memref<1x32x32xbf16, #tpu.memory_space<vmem>>, %arg5: memref<1x1x32xf32, #tpu.memory_space<vmem>>, %arg6: memref<1x32x32xbf16, #tpu.memory_space<vmem>>, %arg7: memref<1x1x32xf32, #tpu.memory_space<vmem>>, %arg8: memref<1x32x32xbf16, #tpu.memory_space<vmem>>, %arg9: memref<1x1x32xf32, #tpu.memory_space<vmem>>, %arg10: memref<1x1x32xf32, #tpu.memory_space<vmem>>, %arg11: memref<1x1x32xf32, #tpu.memory_space<vmem>>, %arg12: memref<1x32x64xbf16, #tpu.memory_space<vmem>>, %arg13: memref<1x1x64xf32, #tpu.memory_space<vmem>>, %arg14: memref<1x64x32xbf16, #tpu.memory_space<vmem>>, %arg15: memref<1x1x32xf32, #tpu.memory_space<vmem>>, %arg16: memref<1x1x32xf32, #tpu.memory_space<vmem>>, %arg17: memref<1x1x32xf32, #tpu.memory_space<vmem>>, %arg18: memref<2x8x32xf32, #tpu.memory_space<vmem>>, %arg19: memref<2x8x32xf32, #tpu.memory_space<vmem>>, %arg20: memref<2x8x32xbf16, #tpu.memory_space<vmem>>) attributes {dimension_semantics = [#tpu.dimension_semantics<parallel>, #tpu.dimension_semantics<arbitrary>], iteration_bounds = array<i64: 1, 2>, scalar_prefetch = 0 : i64, scratch_operands = 2 : i64, tpu.core_type = #tpu.core_type<tc>, window_params = [{transform_indices = @transform_0, window_bounds = array<i64: 2, 8, 32>}, {transform_indices = @transform_1, window_bounds = array<i64: 2, 8, 32>}, {transform_indices = @transform_2, window_bounds = array<i64: 1, 32, 32>}, {transform_indices = @transform_3, window_bounds = array<i64: 1, 1, 32>}, {transform_indices = @transform_4, window_bounds = array<i64: 1, 32, 32>}, {transform_indices = @transform_5, window_bounds = array<i64: 1, 1, 32>}, {transform_indices = @transform_6, window_bounds = array<i64: 1, 32, 32>}, {transform_indices = @transform_7, window_bounds = array<i64: 1, 1, 32>}, {transform_indices = @transform_8, window_bounds = array<i64: 1, 1, 32>}, {transform_indices = @transform_9, window_bounds = array<i64: 1, 1, 32>}, {transform_indices = @transform_10, window_bounds = array<i64: 1, 32, 64>}, {transform_indices = @transform_11, window_bounds = array<i64: 1, 1, 64>}, {transform_indices = @transform_12, window_bounds = array<i64: 1, 64, 32>}, {transform_indices = @transform_13, window_bounds = array<i64: 1, 1, 32>}, {transform_indices = @transform_14, window_bounds = array<i64: 1, 1, 32>}, {transform_indices = @transform_15, window_bounds = array<i64: 1, 1, 32>}, {transform_indices = @transform_16, window_bounds = array<i64: 2, 8, 32>}]} {
    %c0_i32 = arith.constant 0 : i32
    %0 = arith.cmpi eq, %arg1, %c0_i32 : i32
    %1 = arith.extui %0 : i1 to i32
    %c0_i32_0 = arith.constant 0 : i32
    %2 = arith.cmpi ne, %1, %c0_i32_0 : i32
    scf.if %2 {
      %c0_99 = arith.constant 0 : index
      %c0_100 = arith.constant 0 : index
      %c0_101 = arith.constant 0 : index
      %220 = vector.load %arg2[%c0_99, %c0_100, %c0_101] : memref<2x8x32xf32, #tpu.memory_space<vmem>>, vector<2x8x32xf32>
      %c0_102 = arith.constant 0 : index
      %c0_103 = arith.constant 0 : index
      %c0_104 = arith.constant 0 : index
      %221 = vector.load %arg19[%c0_102, %c0_103, %c0_104] : memref<2x8x32xf32, #tpu.memory_space<vmem>>, vector<2x8x32xf32>
      tpu.vector_store %arg19[%c0_102, %c0_103, %c0_104], %220 {strides = array<i32>} : memref<2x8x32xf32, #tpu.memory_space<vmem>>, vector<2x8x32xf32>,
      %c0_105 = arith.constant 0 : index
      %c0_106 = arith.constant 0 : index
      %c0_107 = arith.constant 0 : index
      %222 = vector.load %arg3[%c0_105, %c0_106, %c0_107] : memref<2x8x32xf32, #tpu.memory_space<vmem>>, vector<2x8x32xf32>
      %223 = arith.truncf %222 : vector<2x8x32xf32> to vector<2x8x32xbf16>
      %c0_108 = arith.constant 0 : index
      %c0_109 = arith.constant 0 : index
      %c0_110 = arith.constant 0 : index
      %224 = vector.load %arg20[%c0_108, %c0_109, %c0_110] : memref<2x8x32xbf16, #tpu.memory_space<vmem>>, vector<2x8x32xbf16>
      tpu.vector_store %arg20[%c0_108, %c0_109, %c0_110], %223 {strides = array<i32>} : memref<2x8x32xbf16, #tpu.memory_space<vmem>>, vector<2x8x32xbf16>,
    } else {
    }
    %c0 = arith.constant 0 : index
    %c0_1 = arith.constant 0 : index
    %c0_2 = arith.constant 0 : index
    %3 = vector.load %arg19[%c0, %c0_1, %c0_2] : memref<2x8x32xf32, #tpu.memory_space<vmem>>, vector<2x8x32xf32>
    %4 = vector.shape_cast %3 : vector<2x8x32xf32> to vector<16x32xf32>
    %c0_3 = arith.constant 0 : index
    %c0_4 = arith.constant 0 : index
    %c0_5 = arith.constant 0 : index
    %5 = vector.load %arg20[%c0_3, %c0_4, %c0_5] : memref<2x8x32xbf16, #tpu.memory_space<vmem>>, vector<2x8x32xbf16>
    %6 = vector.shape_cast %5 : vector<2x8x32xbf16> to vector<16x32xbf16>
    %c0_6 = arith.constant 0 : index
    %c0_7 = arith.constant 0 : index
    %c0_8 = arith.constant 0 : index
    %7 = vector.load %arg4[%c0_6, %c0_7, %c0_8] : memref<1x32x32xbf16, #tpu.memory_space<vmem>>, vector<1x32x32xbf16>
    %8 = vector.shape_cast %7 : vector<1x32x32xbf16> to vector<32x32xbf16>
    %c0_9 = arith.constant 0 : index
    %c0_10 = arith.constant 0 : index
    %c0_11 = arith.constant 0 : index
    %9 = vector.load %arg6[%c0_9, %c0_10, %c0_11] : memref<1x32x32xbf16, #tpu.memory_space<vmem>>, vector<1x32x32xbf16>
    %10 = vector.shape_cast %9 : vector<1x32x32xbf16> to vector<32x32xbf16>
    %c0_12 = arith.constant 0 : index
    %c0_13 = arith.constant 0 : index
    %c0_14 = arith.constant 0 : index
    %11 = vector.load %arg8[%c0_12, %c0_13, %c0_14] : memref<1x32x32xbf16, #tpu.memory_space<vmem>>, vector<1x32x32xbf16>
    %12 = vector.shape_cast %11 : vector<1x32x32xbf16> to vector<32x32xbf16>
    %13 = arith.truncf %4 : vector<16x32xf32> to vector<16x32xbf16>
    %cst = arith.constant dense<0.000000e+00> : vector<16x32xf32>
    %14 = tpu.matmul %13, %8, %cst {dimension_numbers = #tpu.dot_dimension_numbers<[1], [0], [0], [1], [0, 0, 1, 1], [], []>} : vector<16x32xbf16>, vector<32x32xbf16>, vector<16x32xf32> -> vector<16x32xf32>
    %c0_15 = arith.constant 0 : index
    %c0_16 = arith.constant 0 : index
    %c0_17 = arith.constant 0 : index
    %15 = vector.load %arg5[%c0_15, %c0_16, %c0_17] : memref<1x1x32xf32, #tpu.memory_space<vmem>>, vector<1x1x32xf32>
    %16 = vector.shape_cast %15 : vector<1x1x32xf32> to vector<1x32xf32>
    %17 = vector.broadcast %16 : vector<1x32xf32> to vector<16x32xf32>
    %18 = arith.addf %14, %17 : vector<16x32xf32>
    %cst_18 = arith.constant dense<0.000000e+00> : vector<16x32xf32>
    %19 = tpu.matmul %6, %10, %cst_18 {dimension_numbers = #tpu.dot_dimension_numbers<[1], [0], [0], [1], [0, 0, 1, 1], [], []>} : vector<16x32xbf16>, vector<32x32xbf16>, vector<16x32xf32> -> vector<16x32xf32>
    %c0_19 = arith.constant 0 : index
    %c0_20 = arith.constant 0 : index
    %c0_21 = arith.constant 0 : index
    %20 = vector.load %arg7[%c0_19, %c0_20, %c0_21] : memref<1x1x32xf32, #tpu.memory_space<vmem>>, vector<1x1x32xf32>
    %21 = vector.shape_cast %20 : vector<1x1x32xf32> to vector<1x32xf32>
    %22 = vector.broadcast %21 : vector<1x32xf32> to vector<16x32xf32>
    %23 = arith.addf %19, %22 : vector<16x32xf32>
    %24 = arith.truncf %18 : vector<16x32xf32> to vector<16x32xbf16>
    %25 = arith.truncf %23 : vector<16x32xf32> to vector<16x32xbf16>
    %26 = tpu.iota {dimensions = array<i32: 0>} : vector<8x8xi32>
    %27 = tpu.iota {dimensions = array<i32: 1>} : vector<8x8xi32>
    %28 = arith.cmpi slt, %27, %26 : vector<8x8xi32>
    %29 = tpu.iota {dimensions = array<i32: 0>} : vector<8x1xi32>
    %c0_i32_22 = arith.constant 0 : i32
    %30 = vector.broadcast %c0_i32_22 : i32 to vector<8x1xi32>
    %31 = arith.cmpi eq, %29, %30 : vector<8x1xi32>
    %32 = vector.extract_strided_slice %24 {offsets = [0, 0], sizes = [8, 32], strides = [1, 1]} : vector<16x32xbf16> to vector<8x32xbf16>
    %33 = vector.extract_strided_slice %25 {offsets = [0, 0], sizes = [8, 32], strides = [1, 1]} : vector<16x32xbf16> to vector<8x32xbf16>
    %cst_23 = arith.constant 0.000000e+00 : f32
    %34 = vector.broadcast %cst_23 : f32 to vector<8x32xf32>
    %35 = vector.extract_strided_slice %32 {offsets = [0, 0], sizes = [8, 16], strides = [1, 1]} : vector<8x32xbf16> to vector<8x16xbf16>
    %cst_24 = arith.constant dense<0.000000e+00> : vector<8x8xf32>
    %36 = tpu.matmul %35, %35, %cst_24 {dimension_numbers = #tpu.dot_dimension_numbers<[1], [1], [0], [0], [0, 0, 1, 0], [], []>} : vector<8x16xbf16>, vector<8x16xbf16>, vector<8x8xf32> -> vector<8x8xf32>
    %cst_25 = arith.constant 2.500000e-01 : f32
    %37 = vector.broadcast %cst_25 : f32 to vector<8x8xf32>
    %38 = arith.mulf %36, %37 : vector<8x8xf32>
    %cst_26 = arith.constant -1.000000e+32 : f32
    %39 = vector.broadcast %cst_26 : f32 to vector<8x8xf32>
    %40 = arith.select %28, %38, %39 : vector<8x8xi1>, vector<8x8xf32>
    %cst_27 = arith.constant dense<0xFF800000> : vector<8xf32>
    %41 = vector.multi_reduction <maximumf>, %40, %cst_27 [1] : vector<8x8xf32> to vector<8xf32>
    %42 = vector.shape_cast %41 : vector<8xf32> to vector<8x1xf32>
    %43 = vector.broadcast %42 : vector<8x1xf32> to vector<8x8xf32>
    %44 = arith.subf %40, %43 : vector<8x8xf32>
    %45 = math.exp %44 : vector<8x8xf32>
    %cst_28 = arith.constant dense<0.000000e+00> : vector<8xf32>
    %46 = vector.multi_reduction <add>, %45, %cst_28 [1] : vector<8x8xf32> to vector<8xf32>
    %47 = vector.shape_cast %46 : vector<8xf32> to vector<8x1xf32>
    %48 = tpu.reciprocal %47 {approx = true} : vector<8x1xf32> -> vector<8x1xf32>
    %49 = vector.broadcast %48 : vector<8x1xf32> to vector<8x8xf32>
    %50 = arith.mulf %45, %49 : vector<8x8xf32>
    %51 = arith.truncf %50 : vector<8x8xf32> to vector<8x8xbf16>
    %52 = vector.extract_strided_slice %33 {offsets = [0, 0], sizes = [8, 16], strides = [1, 1]} : vector<8x32xbf16> to vector<8x16xbf16>
    %cst_29 = arith.constant dense<0.000000e+00> : vector<8x16xf32>
    %53 = tpu.matmul %51, %52, %cst_29 {dimension_numbers = #tpu.dot_dimension_numbers<[1], [0], [0], [1], [0, 0, 1, 1], [], []>} : vector<8x8xbf16>, vector<8x16xbf16>, vector<8x16xf32> -> vector<8x16xf32>
    %54 = arith.truncf %53 : vector<8x16xf32> to vector<8x16xbf16>
    %55 = vector.extract_strided_slice %12 {offsets = [0, 0], sizes = [16, 32], strides = [1, 1]} : vector<32x32xbf16> to vector<16x32xbf16>
    %cst_30 = arith.constant dense<0.000000e+00> : vector<8x32xf32>
    %56 = tpu.matmul %54, %55, %cst_30 {dimension_numbers = #tpu.dot_dimension_numbers<[1], [0], [0], [1], [0, 0, 1, 1], [], []>} : vector<8x16xbf16>, vector<16x32xbf16>, vector<8x32xf32> -> vector<8x32xf32>
    %57 = arith.addf %34, %56 : vector<8x32xf32>
    %58 = vector.extract_strided_slice %32 {offsets = [0, 16], sizes = [8, 16], strides = [1, 1]} : vector<8x32xbf16> to vector<8x16xbf16>
    %cst_31 = arith.constant dense<0.000000e+00> : vector<8x8xf32>
    %59 = tpu.matmul %58, %58, %cst_31 {dimension_numbers = #tpu.dot_dimension_numbers<[1], [1], [0], [0], [0, 0, 1, 0], [], []>} : vector<8x16xbf16>, vector<8x16xbf16>, vector<8x8xf32> -> vector<8x8xf32>
    %cst_32 = arith.constant 2.500000e-01 : f32
    %60 = vector.broadcast %cst_32 : f32 to vector<8x8xf32>
    %61 = arith.mulf %59, %60 : vector<8x8xf32>
    %cst_33 = arith.constant -1.000000e+32 : f32
    %62 = vector.broadcast %cst_33 : f32 to vector<8x8xf32>
    %63 = arith.select %28, %61, %62 : vector<8x8xi1>, vector<8x8xf32>
    %cst_34 = arith.constant dense<0xFF800000> : vector<8xf32>
    %64 = vector.multi_reduction <maximumf>, %63, %cst_34 [1] : vector<8x8xf32> to vector<8xf32>
    %65 = vector.shape_cast %64 : vector<8xf32> to vector<8x1xf32>
    %66 = vector.broadcast %65 : vector<8x1xf32> to vector<8x8xf32>
    %67 = arith.subf %63, %66 : vector<8x8xf32>
    %68 = math.exp %67 : vector<8x8xf32>
    %cst_35 = arith.constant dense<0.000000e+00> : vector<8xf32>
    %69 = vector.multi_reduction <add>, %68, %cst_35 [1] : vector<8x8xf32> to vector<8xf32>
    %70 = vector.shape_cast %69 : vector<8xf32> to vector<8x1xf32>
    %71 = tpu.reciprocal %70 {approx = true} : vector<8x1xf32> -> vector<8x1xf32>
    %72 = vector.broadcast %71 : vector<8x1xf32> to vector<8x8xf32>
    %73 = arith.mulf %68, %72 : vector<8x8xf32>
    %74 = arith.truncf %73 : vector<8x8xf32> to vector<8x8xbf16>
    %75 = vector.extract_strided_slice %33 {offsets = [0, 16], sizes = [8, 16], strides = [1, 1]} : vector<8x32xbf16> to vector<8x16xbf16>
    %cst_36 = arith.constant dense<0.000000e+00> : vector<8x16xf32>
    %76 = tpu.matmul %74, %75, %cst_36 {dimension_numbers = #tpu.dot_dimension_numbers<[1], [0], [0], [1], [0, 0, 1, 1], [], []>} : vector<8x8xbf16>, vector<8x16xbf16>, vector<8x16xf32> -> vector<8x16xf32>
    %77 = arith.truncf %76 : vector<8x16xf32> to vector<8x16xbf16>
    %78 = vector.extract_strided_slice %12 {offsets = [16, 0], sizes = [16, 32], strides = [1, 1]} : vector<32x32xbf16> to vector<16x32xbf16>
    %cst_37 = arith.constant dense<0.000000e+00> : vector<8x32xf32>
    %79 = tpu.matmul %77, %78, %cst_37 {dimension_numbers = #tpu.dot_dimension_numbers<[1], [0], [0], [1], [0, 0, 1, 1], [], []>} : vector<8x16xbf16>, vector<16x32xbf16>, vector<8x32xf32> -> vector<8x32xf32>
    %80 = arith.addf %57, %79 : vector<8x32xf32>
    %cst_38 = arith.constant 0.000000e+00 : f32
    %81 = vector.shape_cast %31 : vector<8x1xi1> to vector<8x1xi1>
    %82 = vector.broadcast %81 : vector<8x1xi1> to vector<8x32xi1>
    %83 = vector.broadcast %cst_38 : f32 to vector<8x32xf32>
    %84 = arith.select %82, %83, %80 : vector<8x32xi1>, vector<8x32xf32>
    %85 = vector.extract_strided_slice %24 {offsets = [8, 0], sizes = [8, 32], strides = [1, 1]} : vector<16x32xbf16> to vector<8x32xbf16>
    %86 = vector.extract_strided_slice %25 {offsets = [8, 0], sizes = [8, 32], strides = [1, 1]} : vector<16x32xbf16> to vector<8x32xbf16>
    %cst_39 = arith.constant 0.000000e+00 : f32
    %87 = vector.broadcast %cst_39 : f32 to vector<8x32xf32>
    %88 = vector.extract_strided_slice %85 {offsets = [0, 0], sizes = [8, 16], strides = [1, 1]} : vector<8x32xbf16> to vector<8x16xbf16>
    %cst_40 = arith.constant dense<0.000000e+00> : vector<8x8xf32>
    %89 = tpu.matmul %88, %88, %cst_40 {dimension_numbers = #tpu.dot_dimension_numbers<[1], [1], [0], [0], [0, 0, 1, 0], [], []>} : vector<8x16xbf16>, vector<8x16xbf16>, vector<8x8xf32> -> vector<8x8xf32>
    %cst_41 = arith.constant 2.500000e-01 : f32
    %90 = vector.broadcast %cst_41 : f32 to vector<8x8xf32>
    %91 = arith.mulf %89, %90 : vector<8x8xf32>
    %cst_42 = arith.constant -1.000000e+32 : f32
    %92 = vector.broadcast %cst_42 : f32 to vector<8x8xf32>
    %93 = arith.select %28, %91, %92 : vector<8x8xi1>, vector<8x8xf32>
    %cst_43 = arith.constant dense<0xFF800000> : vector<8xf32>
    %94 = vector.multi_reduction <maximumf>, %93, %cst_43 [1] : vector<8x8xf32> to vector<8xf32>
    %95 = vector.shape_cast %94 : vector<8xf32> to vector<8x1xf32>
    %96 = vector.broadcast %95 : vector<8x1xf32> to vector<8x8xf32>
    %97 = arith.subf %93, %96 : vector<8x8xf32>
    %98 = math.exp %97 : vector<8x8xf32>
    %cst_44 = arith.constant dense<0.000000e+00> : vector<8xf32>
    %99 = vector.multi_reduction <add>, %98, %cst_44 [1] : vector<8x8xf32> to vector<8xf32>
    %100 = vector.shape_cast %99 : vector<8xf32> to vector<8x1xf32>
    %101 = tpu.reciprocal %100 {approx = true} : vector<8x1xf32> -> vector<8x1xf32>
    %102 = vector.broadcast %101 : vector<8x1xf32> to vector<8x8xf32>
    %103 = arith.mulf %98, %102 : vector<8x8xf32>
    %104 = arith.truncf %103 : vector<8x8xf32> to vector<8x8xbf16>
    %105 = vector.extract_strided_slice %86 {offsets = [0, 0], sizes = [8, 16], strides = [1, 1]} : vector<8x32xbf16> to vector<8x16xbf16>
    %cst_45 = arith.constant dense<0.000000e+00> : vector<8x16xf32>
    %106 = tpu.matmul %104, %105, %cst_45 {dimension_numbers = #tpu.dot_dimension_numbers<[1], [0], [0], [1], [0, 0, 1, 1], [], []>} : vector<8x8xbf16>, vector<8x16xbf16>, vector<8x16xf32> -> vector<8x16xf32>
    %107 = arith.truncf %106 : vector<8x16xf32> to vector<8x16xbf16>
    %108 = vector.extract_strided_slice %12 {offsets = [0, 0], sizes = [16, 32], strides = [1, 1]} : vector<32x32xbf16> to vector<16x32xbf16>
    %cst_46 = arith.constant dense<0.000000e+00> : vector<8x32xf32>
    %109 = tpu.matmul %107, %108, %cst_46 {dimension_numbers = #tpu.dot_dimension_numbers<[1], [0], [0], [1], [0, 0, 1, 1], [], []>} : vector<8x16xbf16>, vector<16x32xbf16>, vector<8x32xf32> -> vector<8x32xf32>
    %110 = arith.addf %87, %109 : vector<8x32xf32>
    %111 = vector.extract_strided_slice %85 {offsets = [0, 16], sizes = [8, 16], strides = [1, 1]} : vector<8x32xbf16> to vector<8x16xbf16>
    %cst_47 = arith.constant dense<0.000000e+00> : vector<8x8xf32>
    %112 = tpu.matmul %111, %111, %cst_47 {dimension_numbers = #tpu.dot_dimension_numbers<[1], [1], [0], [0], [0, 0, 1, 0], [], []>} : vector<8x16xbf16>, vector<8x16xbf16>, vector<8x8xf32> -> vector<8x8xf32>
    %cst_48 = arith.constant 2.500000e-01 : f32
    %113 = vector.broadcast %cst_48 : f32 to vector<8x8xf32>
    %114 = arith.mulf %112, %113 : vector<8x8xf32>
    %cst_49 = arith.constant -1.000000e+32 : f32
    %115 = vector.broadcast %cst_49 : f32 to vector<8x8xf32>
    %116 = arith.select %28, %114, %115 : vector<8x8xi1>, vector<8x8xf32>
    %cst_50 = arith.constant dense<0xFF800000> : vector<8xf32>
    %117 = vector.multi_reduction <maximumf>, %116, %cst_50 [1] : vector<8x8xf32> to vector<8xf32>
    %118 = vector.shape_cast %117 : vector<8xf32> to vector<8x1xf32>
    %119 = vector.broadcast %118 : vector<8x1xf32> to vector<8x8xf32>
    %120 = arith.subf %116, %119 : vector<8x8xf32>
    %121 = math.exp %120 : vector<8x8xf32>
    %cst_51 = arith.constant dense<0.000000e+00> : vector<8xf32>
    %122 = vector.multi_reduction <add>, %121, %cst_51 [1] : vector<8x8xf32> to vector<8xf32>
    %123 = vector.shape_cast %122 : vector<8xf32> to vector<8x1xf32>
    %124 = tpu.reciprocal %123 {approx = true} : vector<8x1xf32> -> vector<8x1xf32>
    %125 = vector.broadcast %124 : vector<8x1xf32> to vector<8x8xf32>
    %126 = arith.mulf %121, %125 : vector<8x8xf32>
    %127 = arith.truncf %126 : vector<8x8xf32> to vector<8x8xbf16>
    %128 = vector.extract_strided_slice %86 {offsets = [0, 16], sizes = [8, 16], strides = [1, 1]} : vector<8x32xbf16> to vector<8x16xbf16>
    %cst_52 = arith.constant dense<0.000000e+00> : vector<8x16xf32>
    %129 = tpu.matmul %127, %128, %cst_52 {dimension_numbers = #tpu.dot_dimension_numbers<[1], [0], [0], [1], [0, 0, 1, 1], [], []>} : vector<8x8xbf16>, vector<8x16xbf16>, vector<8x16xf32> -> vector<8x16xf32>
    %130 = arith.truncf %129 : vector<8x16xf32> to vector<8x16xbf16>
    %131 = vector.extract_strided_slice %12 {offsets = [16, 0], sizes = [16, 32], strides = [1, 1]} : vector<32x32xbf16> to vector<16x32xbf16>
    %cst_53 = arith.constant dense<0.000000e+00> : vector<8x32xf32>
    %132 = tpu.matmul %130, %131, %cst_53 {dimension_numbers = #tpu.dot_dimension_numbers<[1], [0], [0], [1], [0, 0, 1, 1], [], []>} : vector<8x16xbf16>, vector<16x32xbf16>, vector<8x32xf32> -> vector<8x32xf32>
    %133 = arith.addf %110, %132 : vector<8x32xf32>
    %cst_54 = arith.constant 0.000000e+00 : f32
    %134 = vector.shape_cast %31 : vector<8x1xi1> to vector<8x1xi1>
    %135 = vector.broadcast %134 : vector<8x1xi1> to vector<8x32xi1>
    %136 = vector.broadcast %cst_54 : f32 to vector<8x32xf32>
    %137 = arith.select %135, %136, %133 : vector<8x32xi1>, vector<8x32xf32>
    %138 = tpu.concatenate %84, %137 in 0 : vector<8x32xf32>, vector<8x32xf32> -> vector<16x32xf32>
    %c0_55 = arith.constant 0 : index
    %c0_56 = arith.constant 0 : index
    %c0_57 = arith.constant 0 : index
    %139 = vector.load %arg9[%c0_55, %c0_56, %c0_57] : memref<1x1x32xf32, #tpu.memory_space<vmem>>, vector<1x1x32xf32>
    %140 = vector.shape_cast %139 : vector<1x1x32xf32> to vector<1x32xf32>
    %141 = vector.broadcast %140 : vector<1x32xf32> to vector<16x32xf32>
    %142 = arith.addf %138, %141 : vector<16x32xf32>
    %143 = arith.addf %4, %142 : vector<16x32xf32>
    %c0_58 = arith.constant 0 : index
    %c0_59 = arith.constant 0 : index
    %c0_60 = arith.constant 0 : index
    %144 = vector.load %arg10[%c0_58, %c0_59, %c0_60] : memref<1x1x32xf32, #tpu.memory_space<vmem>>, vector<1x1x32xf32>
    %145 = vector.shape_cast %144 : vector<1x1x32xf32> to vector<1x32xf32>
    %c0_61 = arith.constant 0 : index
    %c0_62 = arith.constant 0 : index
    %c0_63 = arith.constant 0 : index
    %146 = vector.load %arg11[%c0_61, %c0_62, %c0_63] : memref<1x1x32xf32, #tpu.memory_space<vmem>>, vector<1x1x32xf32>
    %147 = vector.shape_cast %146 : vector<1x1x32xf32> to vector<1x32xf32>
    %cst_64 = arith.constant dense<0.000000e+00> : vector<16xf32>
    %148 = vector.multi_reduction <add>, %143, %cst_64 [1] : vector<16x32xf32> to vector<16xf32>
    %149 = vector.shape_cast %148 : vector<16xf32> to vector<16x1xf32>
    %cst_65 = arith.constant 3.200000e+01 : f32
    %150 = vector.broadcast %cst_65 : f32 to vector<16x1xf32>
    %151 = arith.divf %149, %150 : vector<16x1xf32>
    %152 = vector.broadcast %151 : vector<16x1xf32> to vector<16x32xf32>
    %153 = arith.subf %143, %152 : vector<16x32xf32>
    %154 = arith.mulf %153, %153 : vector<16x32xf32>
    %cst_66 = arith.constant dense<0.000000e+00> : vector<16xf32>
    %155 = vector.multi_reduction <add>, %154, %cst_66 [1] : vector<16x32xf32> to vector<16xf32>
    %156 = vector.shape_cast %155 : vector<16xf32> to vector<16x1xf32>
    %cst_67 = arith.constant 3.200000e+01 : f32
    %157 = vector.broadcast %cst_67 : f32 to vector<16x1xf32>
    %158 = arith.divf %156, %157 : vector<16x1xf32>
    %159 = vector.broadcast %151 : vector<16x1xf32> to vector<16x32xf32>
    %160 = arith.subf %143, %159 : vector<16x32xf32>
    %cst_68 = arith.constant 9.99999974E-6 : f32
    %161 = vector.broadcast %cst_68 : f32 to vector<16x1xf32>
    %162 = arith.addf %158, %161 : vector<16x1xf32>
    %163 = math.rsqrt %162 : vector<16x1xf32>
    %164 = vector.broadcast %163 : vector<16x1xf32> to vector<16x32xf32>
    %165 = arith.mulf %160, %164 : vector<16x32xf32>
    %166 = vector.broadcast %145 : vector<1x32xf32> to vector<16x32xf32>
    %167 = arith.mulf %165, %166 : vector<16x32xf32>
    %168 = vector.broadcast %147 : vector<1x32xf32> to vector<16x32xf32>
    %169 = arith.addf %167, %168 : vector<16x32xf32>
    %170 = arith.truncf %169 : vector<16x32xf32> to vector<16x32xbf16>
    %c0_69 = arith.constant 0 : index
    %c0_70 = arith.constant 0 : index
    %c0_71 = arith.constant 0 : index
    %171 = vector.load %arg12[%c0_69, %c0_70, %c0_71] : memref<1x32x64xbf16, #tpu.memory_space<vmem>>, vector<1x32x64xbf16>
    %172 = vector.shape_cast %171 : vector<1x32x64xbf16> to vector<32x64xbf16>
    %cst_72 = arith.constant dense<0.000000e+00> : vector<16x64xf32>
    %173 = tpu.matmul %170, %172, %cst_72 {dimension_numbers = #tpu.dot_dimension_numbers<[1], [0], [0], [1], [0, 0, 1, 1], [], []>} : vector<16x32xbf16>, vector<32x64xbf16>, vector<16x64xf32> -> vector<16x64xf32>
    %c0_73 = arith.constant 0 : index
    %c0_74 = arith.constant 0 : index
    %c0_75 = arith.constant 0 : index
    %174 = vector.load %arg13[%c0_73, %c0_74, %c0_75] : memref<1x1x64xf32, #tpu.memory_space<vmem>>, vector<1x1x64xf32>
    %175 = vector.shape_cast %174 : vector<1x1x64xf32> to vector<1x64xf32>
    %176 = vector.broadcast %175 : vector<1x64xf32> to vector<16x64xf32>
    %177 = arith.addf %173, %176 : vector<16x64xf32>
    %cst_76 = arith.constant 0.000000e+00 : f32
    %178 = vector.broadcast %cst_76 : f32 to vector<16x64xf32>
    %179 = arith.maximumf %177, %178 : vector<16x64xf32>
    %180 = arith.truncf %179 : vector<16x64xf32> to vector<16x64xbf16>
    %c0_77 = arith.constant 0 : index
    %c0_78 = arith.constant 0 : index
    %c0_79 = arith.constant 0 : index
    %181 = vector.load %arg14[%c0_77, %c0_78, %c0_79] : memref<1x64x32xbf16, #tpu.memory_space<vmem>>, vector<1x64x32xbf16>
    %182 = vector.shape_cast %181 : vector<1x64x32xbf16> to vector<64x32xbf16>
    %cst_80 = arith.constant dense<0.000000e+00> : vector<16x32xf32>
    %183 = tpu.matmul %180, %182, %cst_80 {dimension_numbers = #tpu.dot_dimension_numbers<[1], [0], [0], [1], [0, 0, 1, 1], [], []>} : vector<16x64xbf16>, vector<64x32xbf16>, vector<16x32xf32> -> vector<16x32xf32>
    %c0_81 = arith.constant 0 : index
    %c0_82 = arith.constant 0 : index
    %c0_83 = arith.constant 0 : index
    %184 = vector.load %arg15[%c0_81, %c0_82, %c0_83] : memref<1x1x32xf32, #tpu.memory_space<vmem>>, vector<1x1x32xf32>
    %185 = vector.shape_cast %184 : vector<1x1x32xf32> to vector<1x32xf32>
    %186 = vector.broadcast %185 : vector<1x32xf32> to vector<16x32xf32>
    %187 = arith.addf %183, %186 : vector<16x32xf32>
    %188 = arith.addf %169, %187 : vector<16x32xf32>
    %c0_84 = arith.constant 0 : index
    %c0_85 = arith.constant 0 : index
    %c0_86 = arith.constant 0 : index
    %189 = vector.load %arg16[%c0_84, %c0_85, %c0_86] : memref<1x1x32xf32, #tpu.memory_space<vmem>>, vector<1x1x32xf32>
    %190 = vector.shape_cast %189 : vector<1x1x32xf32> to vector<1x32xf32>
    %c0_87 = arith.constant 0 : index
    %c0_88 = arith.constant 0 : index
    %c0_89 = arith.constant 0 : index
    %191 = vector.load %arg17[%c0_87, %c0_88, %c0_89] : memref<1x1x32xf32, #tpu.memory_space<vmem>>, vector<1x1x32xf32>
    %192 = vector.shape_cast %191 : vector<1x1x32xf32> to vector<1x32xf32>
    %cst_90 = arith.constant dense<0.000000e+00> : vector<16xf32>
    %193 = vector.multi_reduction <add>, %188, %cst_90 [1] : vector<16x32xf32> to vector<16xf32>
    %194 = vector.shape_cast %193 : vector<16xf32> to vector<16x1xf32>
    %cst_91 = arith.constant 3.200000e+01 : f32
    %195 = vector.broadcast %cst_91 : f32 to vector<16x1xf32>
    %196 = arith.divf %194, %195 : vector<16x1xf32>
    %197 = vector.broadcast %196 : vector<16x1xf32> to vector<16x32xf32>
    %198 = arith.subf %188, %197 : vector<16x32xf32>
    %199 = arith.mulf %198, %198 : vector<16x32xf32>
    %cst_92 = arith.constant dense<0.000000e+00> : vector<16xf32>
    %200 = vector.multi_reduction <add>, %199, %cst_92 [1] : vector<16x32xf32> to vector<16xf32>
    %201 = vector.shape_cast %200 : vector<16xf32> to vector<16x1xf32>
    %cst_93 = arith.constant 3.200000e+01 : f32
    %202 = vector.broadcast %cst_93 : f32 to vector<16x1xf32>
    %203 = arith.divf %201, %202 : vector<16x1xf32>
    %204 = vector.broadcast %196 : vector<16x1xf32> to vector<16x32xf32>
    %205 = arith.subf %188, %204 : vector<16x32xf32>
    %cst_94 = arith.constant 9.99999974E-6 : f32
    %206 = vector.broadcast %cst_94 : f32 to vector<16x1xf32>
    %207 = arith.addf %203, %206 : vector<16x1xf32>
    %208 = math.rsqrt %207 : vector<16x1xf32>
    %209 = vector.broadcast %208 : vector<16x1xf32> to vector<16x32xf32>
    %210 = arith.mulf %205, %209 : vector<16x32xf32>
    %211 = vector.broadcast %190 : vector<1x32xf32> to vector<16x32xf32>
    %212 = arith.mulf %210, %211 : vector<16x32xf32>
    %213 = vector.broadcast %192 : vector<1x32xf32> to vector<16x32xf32>
    %214 = arith.addf %212, %213 : vector<16x32xf32>
    %215 = vector.shape_cast %214 : vector<16x32xf32> to vector<2x8x32xf32>
    %c0_95 = arith.constant 0 : index
    %c0_96 = arith.constant 0 : index
    %c0_97 = arith.constant 0 : index
    %216 = vector.load %arg19[%c0_95, %c0_96, %c0_97] : memref<2x8x32xf32, #tpu.memory_space<vmem>>, vector<2x8x32xf32>
    tpu.vector_store %arg19[%c0_95, %c0_96, %c0_97], %215 {strides = array<i32>} : memref<2x8x32xf32, #tpu.memory_space<vmem>>, vector<2x8x32xf32>,
    %c1_i32 = arith.constant 1 : i32
    %217 = arith.cmpi eq, %arg1, %c1_i32 : i32
    %218 = arith.extui %217 : i1 to i32
    %c0_i32_98 = arith.constant 0 : i32
    %219 = arith.cmpi ne, %218, %c0_i32_98 : i32
    scf.if %219 {
      %220 = vector.shape_cast %214 : vector<16x32xf32> to vector<2x8x32xf32>
      %c0_99 = arith.constant 0 : index
      %c0_100 = arith.constant 0 : index
      %c0_101 = arith.constant 0 : index
      %221 = vector.load %arg18[%c0_99, %c0_100, %c0_101] : memref<2x8x32xf32, #tpu.memory_space<vmem>>, vector<2x8x32xf32>
      tpu.vector_store %arg18[%c0_99, %c0_100, %c0_101], %220 {strides = array<i32>} : memref<2x8x32xf32, #tpu.memory_space<vmem>>, vector<2x8x32xf32>,
    } else {
    }
    return
  }
  func.func @transform_0(%arg0: i32, %arg1: i32) -> (i32, i32, i32) {
    %c0_i32 = arith.constant 0 : i32
    %c0_i32_0 = arith.constant 0 : i32
    %c0_i32_1 = arith.constant 0 : i32
    return %arg0, %c0_i32, %c0_i32_0 : i32, i32, i32
  }
  func.func @transform_1(%arg0: i32, %arg1: i32) -> (i32, i32, i32) {
    %c0_i32 = arith.constant 0 : i32
    %c0_i32_0 = arith.constant 0 : i32
    %c0_i32_1 = arith.constant 0 : i32
    return %arg0, %c0_i32, %c0_i32_0 : i32, i32, i32
  }
  func.func @transform_2(%arg0: i32, %arg1: i32) -> (i32, i32, i32) {
    %c0_i32 = arith.constant 0 : i32
    %c0_i32_0 = arith.constant 0 : i32
    %c0_i32_1 = arith.constant 0 : i32
    return %arg1, %c0_i32, %c0_i32_0 : i32, i32, i32
  }
  func.func @transform_3(%arg0: i32, %arg1: i32) -> (i32, i32, i32) {
    %c0_i32 = arith.constant 0 : i32
    %c0_i32_0 = arith.constant 0 : i32
    %c0_i32_1 = arith.constant 0 : i32
    return %arg1, %c0_i32, %c0_i32_0 : i32, i32, i32
  }
  func.func @transform_4(%arg0: i32, %arg1: i32) -> (i32, i32, i32) {
    %c0_i32 = arith.constant 0 : i32
    %c0_i32_0 = arith.constant 0 : i32
    %c0_i32_1 = arith.constant 0 : i32
    return %arg1, %c0_i32, %c0_i32_0 : i32, i32, i32
  }
  func.func @transform_5(%arg0: i32, %arg1: i32) -> (i32, i32, i32) {
    %c0_i32 = arith.constant 0 : i32
    %c0_i32_0 = arith.constant 0 : i32
    %c0_i32_1 = arith.constant 0 : i32
    return %arg1, %c0_i32, %c0_i32_0 : i32, i32, i32
  }
  func.func @transform_6(%arg0: i32, %arg1: i32) -> (i32, i32, i32) {
    %c0_i32 = arith.constant 0 : i32
    %c0_i32_0 = arith.constant 0 : i32
    %c0_i32_1 = arith.constant 0 : i32
    return %arg1, %c0_i32, %c0_i32_0 : i32, i32, i32
  }
  func.func @transform_7(%arg0: i32, %arg1: i32) -> (i32, i32, i32) {
    %c0_i32 = arith.constant 0 : i32
    %c0_i32_0 = arith.constant 0 : i32
    %c0_i32_1 = arith.constant 0 : i32
    return %arg1, %c0_i32, %c0_i32_0 : i32, i32, i32
  }
  func.func @transform_8(%arg0: i32, %arg1: i32) -> (i32, i32, i32) {
    %c0_i32 = arith.constant 0 : i32
    %c0_i32_0 = arith.constant 0 : i32
    %c0_i32_1 = arith.constant 0 : i32
    return %arg1, %c0_i32, %c0_i32_0 : i32, i32, i32
  }
  func.func @transform_9(%arg0: i32, %arg1: i32) -> (i32, i32, i32) {
    %c0_i32 = arith.constant 0 : i32
    %c0_i32_0 = arith.constant 0 : i32
    %c0_i32_1 = arith.constant 0 : i32
    return %arg1, %c0_i32, %c0_i32_0 : i32, i32, i32
  }
  func.func @transform_10(%arg0: i32, %arg1: i32) -> (i32, i32, i32) {
    %c0_i32 = arith.constant 0 : i32
    %c0_i32_0 = arith.constant 0 : i32
    %c0_i32_1 = arith.constant 0 : i32
    return %arg1, %c0_i32, %c0_i32_0 : i32, i32, i32
  }
  func.func @transform_11(%arg0: i32, %arg1: i32) -> (i32, i32, i32) {
    %c0_i32 = arith.constant 0 : i32
    %c0_i32_0 = arith.constant 0 : i32
    %c0_i32_1 = arith.constant 0 : i32
    return %arg1, %c0_i32, %c0_i32_0 : i32, i32, i32
  }
  func.func @transform_12(%arg0: i32, %arg1: i32) -> (i32, i32, i32) {
    %c0_i32 = arith.constant 0 : i32
    %c0_i32_0 = arith.constant 0 : i32
    %c0_i32_1 = arith.constant 0 : i32
    return %arg1, %c0_i32, %c0_i32_0 : i32, i32, i32
  }
  func.func @transform_13(%arg0: i32, %arg1: i32) -> (i32, i32, i32) {
    %c0_i32 = arith.constant 0 : i32
    %c0_i32_0 = arith.constant 0 : i32
    %c0_i32_1 = arith.constant 0 : i32
    return %arg1, %c0_i32, %c0_i32_0 : i32, i32, i32
  }
  func.func @transform_14(%arg0: i32, %arg1: i32) -> (i32, i32, i32) {
    %c0_i32 = arith.constant 0 : i32
    %c0_i32_0 = arith.constant 0 : i32
    %c0_i32_1 = arith.constant 0 : i32
    return %arg1, %c0_i32, %c0_i32_0 : i32, i32, i32
  }
  func.func @transform_15(%arg0: i32, %arg1: i32) -> (i32, i32, i32) {
    %c0_i32 = arith.constant 0 : i32
    %c0_i32_0 = arith.constant 0 : i32
    %c0_i32_1 = arith.constant 0 : i32
    return %arg1, %c0_i32, %c0_i32_0 : i32, i32, i32
  }
  func.func @transform_16(%arg0: i32, %arg1: i32) -> (i32, i32, i32) {
    %c0_i32 = arith.constant 0 : i32
    %c0_i32_0 = arith.constant 0 : i32
    %c0_i32_1 = arith.constant 0 : i32
    return %arg0, %c0_i32, %c0_i32_0 : i32, i32, i32
  }
}

</mosaic_0001>

<llo_original>
// kernel: tpu_custom_call.1
$region0: #{tpu_custom_call.1}
  #allocation0 [shape = 'u32[]', space=smem, size = 0x4, offset = 0x4, fixed_abs, tag = 'smem constant byte address 0x4 - core index']
  #allocation1 [shape = 'u32[144,128]{1,0:T(1,128)}', space=vmem, size = 0x12000, scoped, tag = 'internal scratch']
  #allocation2 [shape = 'f32[2,8,32]{2,1,0:T(8,128)}', space=vmem, size = 0x2000, scoped, tag = 'scratch operand']
  #allocation3 [shape = 'bf16[2,8,32]{2,1,0:T(8,128)(2,1)}', space=vmem, size = 0x1000, scoped, tag = 'scratch operand']
  %s0 = inlined_call_operand.hbm [shape: f32[2,8,32], index: 0, kind: input, shape index: {}]
  %s1 = inlined_call_operand.hbm [shape: f32[2,8,32], index: 1, kind: input, shape index: {}]
  %s2 = inlined_call_operand.hbm [shape: bf16[2,32,32], index: 2, kind: input, shape index: {}]
  %s3 = inlined_call_operand.hbm [shape: f32[2,1,32], index: 3, kind: input, shape index: {}]
  %s4 = inlined_call_operand.hbm [shape: bf16[2,32,32], index: 4, kind: input, shape index: {}]
  %s5 = inlined_call_operand.hbm [shape: f32[2,1,32], index: 5, kind: input, shape index: {}]
  %s6 = inlined_call_operand.hbm [shape: bf16[2,32,32], index: 6, kind: input, shape index: {}]
  %s7 = inlined_call_operand.hbm [shape: f32[2,1,32], index: 7, kind: input, shape index: {}]
  %s8 = inlined_call_operand.hbm [shape: f32[2,1,32], index: 8, kind: input, shape index: {}]
  %s9 = inlined_call_operand.hbm [shape: f32[2,1,32], index: 9, kind: input, shape index: {}]
  %s10 = inlined_call_operand.hbm [shape: bf16[2,32,64], index: 10, kind: input, shape index: {}]
  %s11 = inlined_call_operand.hbm [shape: f32[2,1,64], index: 11, kind: input, shape index: {}]
  %s12 = inlined_call_operand.hbm [shape: bf16[2,64,32], index: 12, kind: input, shape index: {}]
  %s13 = inlined_call_operand.hbm [shape: f32[2,1,32], index: 13, kind: input, shape index: {}]
  %s14 = inlined_call_operand.hbm [shape: f32[2,1,32], index: 14, kind: input, shape index: {}]
  %s15 = inlined_call_operand.hbm [shape: f32[2,1,32], index: 15, kind: input, shape index: {}]
  %s16 = inlined_call_operand.hbm [shape: f32[2,8,32], index: 16, kind: output, shape index: {}]
  %s17 = sld [smem:[#allocation0]]
  $region169: #{tpu_custom_call.1} parent=0
    _
  %s19 = ssub.s32 1, %s17
  %s20 = scalar_select 0, %s19, %s17
  $region1: #{tpu_custom_call.1} parent=0
    #allocation4 [shape = 'u8[8192]{0}', space=vmem, size = 0x2000, scoped, tag = 'input window, operand 0, single buffered']
    #allocation5 [shape = 's32[2]{0}', space=sflag, size = 0x8, scoped, tag = 'scoped memory for tpu_custom_call.1']
    #allocation6 [shape = 's32[2]{0}', space=sflag, size = 0x8, scoped, tag = 'scoped memory for tpu_custom_call.1']
    #allocation7 [shape = 'u8[8192]{0}', space=vmem, size = 0x2000, scoped, tag = 'input window, operand 1, single buffered']
    #allocation8 [shape = 's32[1]{0}', space=sflag, size = 0x4, scoped, tag = 'scoped memory for tpu_custom_call.1']
    #allocation9 [shape = 'u8[16384]{0}', space=vmem, size = 0x4000, scoped, tag = 'input window, operand 2']
    #allocation10 [shape = 'u8[1024]{0}', space=vmem, size = 0x400, scoped, tag = 'input window, operand 3']
    #allocation11 [shape = 'u8[16384]{0}', space=vmem, size = 0x4000, scoped, tag = 'input window, operand 4']
    #allocation12 [shape = 'u8[1024]{0}', space=vmem, size = 0x400, scoped, tag = 'input window, operand 5']
    #allocation13 [shape = 'u8[16384]{0}', space=vmem, size = 0x4000, scoped, tag = 'input window, operand 6']
    #allocation14 [shape = 'u8[1024]{0}', space=vmem, size = 0x400, scoped, tag = 'input window, operand 7']
    #allocation15 [shape = 'u8[1024]{0}', space=vmem, size = 0x400, scoped, tag = 'input window, operand 8']
    #allocation16 [shape = 'u8[1024]{0}', space=vmem, size = 0x400, scoped, tag = 'input window, operand 9']
    #allocation17 [shape = 'u8[16384]{0}', space=vmem, size = 0x4000, scoped, tag = 'input window, operand 10']
    #allocation18 [shape = 'u8[1024]{0}', space=vmem, size = 0x400, scoped, tag = 'input window, operand 11']
    #allocation19 [shape = 'u8[32768]{0}', space=vmem, size = 0x8000, scoped, tag = 'input window, operand 12']
    #allocation20 [shape = 'u8[1024]{0}', space=vmem, size = 0x400, scoped, tag = 'input window, operand 13']
    #allocation21 [shape = 'u8[1024]{0}', space=vmem, size = 0x400, scoped, tag = 'input window, operand 14']
    #allocation22 [shape = 'u8[1024]{0}', space=vmem, size = 0x400, scoped, tag = 'input window, operand 15']
    #allocation23 [shape = 'u8[8192]{0}', space=vmem, size = 0x2000, scoped, tag = 'output window, operand 0, single buffered']
    %21 = vsyncpa [#allocation5], 0
    %22 = vsyncpa [#allocation8], 0
    %23 = vsyncpa [#allocation6], 0
    loop: start=0, step=1, limit=4
    $region2: #{tpu_custom_call.1} parent=1 // loop_pre_header
      _
    $region3: #{tpu_custom_call.1} parent=1 // loop_header
      %s25 = sphi 0, %s29
      %p26 = scmp.ge.s32.totalorder %s25, 4
      %s32 = sphi 0, %s44
      %s33 = sphi 0, %s40
      %s34 = sphi 0, %s32
      %s35 = sphi 0, %s33
      %s36 = sphi 0, %s34
      %s37 = sphi 0, %s35
      %s47 = sphi 0, %s49
      %s50 = sphi 0, %s47
      %s51 = sphi 0, %s50
      %s67 = sphi 0, %s51
      %s73 = sphi 0, %s75
      %s76 = sphi 0, %s73
      %s77 = sphi 0, %s76
      %s93 = sphi 0, %s77
      %s99 = sphi 0, %s101
      %s102 = sphi 0, %s99
      %s103 = sphi 0, %s102
      %s119 = sphi 0, %s103
      %s125 = sphi 0, %s127
      %s128 = sphi 0, %s125
      %s129 = sphi 0, %s128
      %s145 = sphi 0, %s129
      %s151 = sphi 0, %s153
      %s154 = sphi 0, %s151
      %s155 = sphi 0, %s154
      %s171 = sphi 0, %s155
      %s177 = sphi 0, %s179
      %s180 = sphi 0, %s177
      %s181 = sphi 0, %s180
      %s197 = sphi 0, %s181
      %s203 = sphi 0, %s205
      %s206 = sphi 0, %s203
      %s207 = sphi 0, %s206
      %s223 = sphi 0, %s207
      %s229 = sphi 0, %s231
      %s232 = sphi 0, %s229
      %s233 = sphi 0, %s232
      %s249 = sphi 0, %s233
      %s255 = sphi 0, %s257
      %s258 = sphi 0, %s255
      %s259 = sphi 0, %s258
      %s275 = sphi 0, %s259
      %s281 = sphi 0, %s283
      %s284 = sphi 0, %s281
      %s285 = sphi 0, %s284
      %s301 = sphi 0, %s285
      %s307 = sphi 0, %s309
      %s310 = sphi 0, %s307
      %s311 = sphi 0, %s310
      %s327 = sphi 0, %s311
      %s333 = sphi 0, %s335
      %s336 = sphi 0, %s333
      %s337 = sphi 0, %s336
      %s353 = sphi 0, %s337
      %s359 = sphi 0, %s361
      %s362 = sphi 0, %s359
      %s363 = sphi 0, %s362
      %s379 = sphi 0, %s363
      %s385 = sphi 0, %s387
      %s388 = sphi 0, %s385
      %s389 = sphi 0, %s388
      %s405 = sphi 0, %s389
      %s411 = sphi 0, %s413
      %s414 = sphi 0, %s411
      %s415 = sphi 0, %s414
      %s431 = sphi 0, %s415
      %s437 = sphi 0, %s439
      %s440 = sphi 0, %s437
      %s441 = sphi 0, %s440
      %s457 = sphi 0, %s441
      %s463 = sphi 0, %s465
      %s466 = sphi 0, %s463
      %s467 = sphi 0, %s466
      %s483 = sphi 0, %s467
    $region4: #{tpu_custom_call.1} parent=1 // loop_header_branch
      %28 = sbr.rel (%p26) target = $region8
    $region5: #{tpu_custom_call.1} parent=1 // loop_body
      %s30 = ssub.s32 %s25, 1
      %s31 = ssub.s32 %s25, 2
      %s38 = sadd.s32 1, %s33
      %p39 = scmp.ge.s32.totalorder %s38, 2
      %s40 = scalar_select %p39, 0, %s38
      %s41 = sadd.s32 1, %s32
      %s42 = scalar_select %p39, %s41, %s32
      %p43 = scmp.ge.s32.totalorder %s42, 1
      %s44 = scalar_select %p43, 0, %s42
      %s45 = ssub.s32 %s32, %s44
      %p46 = scmp.eq.s32.totalorder %s45, 0
      %s48 = sadd.s32 %s47, 1
      %s49 = scalar_select %p46, %s47, %s48
      %p52 = pneg %p46
      %p53 = scmp.eq.s32.totalorder %s25, 1
      %p54 = por %p52, %p53
      %p55 = scmp.ne.s32.totalorder %s47, %s50
      %p56 = scmp.eq.s32.totalorder %s25, 0
      %p57 = por %p55, %p56
      %p58 = scmp.ne.s32.totalorder %s47, %s50
      %p59 = scmp.eq.s32.totalorder %s30, 1
      %p60 = por %p58, %p59
      %p61 = scmp.ne.s32.totalorder %s50, %s51
      %p62 = scmp.eq.s32.totalorder %s30, 0
      %p63 = por %p61, %p62
      %p64 = scmp.ne.s32.totalorder %s50, %s51
      %p65 = scmp.eq.s32.totalorder %s31, 1
      %p66 = por %p64, %p65
      %p68 = scmp.ne.s32.totalorder %s51, %s67
      %p69 = scmp.eq.s32.totalorder %s31, 0
      %p70 = por %p68, %p69
      %s71 = ssub.s32 %s32, %s44
      %p72 = scmp.eq.s32.totalorder %s71, 0
      %s74 = sadd.s32 %s73, 1
      %s75 = scalar_select %p72, %s73, %s74
      %p78 = pneg %p72
      %p79 = scmp.eq.s32.totalorder %s25, 1
      %p80 = por %p78, %p79
      %p81 = scmp.ne.s32.totalorder %s73, %s76
      %p82 = scmp.eq.s32.totalorder %s25, 0
      %p83 = por %p81, %p82
      %p84 = scmp.ne.s32.totalorder %s73, %s76
      %p85 = scmp.eq.s32.totalorder %s30, 1
      %p86 = por %p84, %p85
      %p87 = scmp.ne.s32.totalorder %s76, %s77
      %p88 = scmp.eq.s32.totalorder %s30, 0
      %p89 = por %p87, %p88
      %p90 = scmp.ne.s32.totalorder %s76, %s77
      %p91 = scmp.eq.s32.totalorder %s31, 1
      %p92 = por %p90, %p91
      %p94 = scmp.ne.s32.totalorder %s77, %s93
      %p95 = scmp.eq.s32.totalorder %s31, 0
      %p96 = por %p94, %p95
      %s97 = ssub.s32 %s33, %s40
      %p98 = scmp.eq.s32.totalorder %s97, 0
      %s100 = sadd.s32 %s99, 1
      %s101 = scalar_select %p98, %s99, %s100
      %p104 = pneg %p98
      %p105 = scmp.eq.s32.totalorder %s25, 1
      %p106 = por %p104, %p105
      %p107 = scmp.ne.s32.totalorder %s99, %s102
      %p108 = scmp.eq.s32.totalorder %s25, 0
      %p109 = por %p107, %p108
      %p110 = scmp.ne.s32.totalorder %s99, %s102
      %p111 = scmp.eq.s32.totalorder %s30, 1
      %p112 = por %p110, %p111
      %p113 = scmp.ne.s32.totalorder %s102, %s103
      %p114 = scmp.eq.s32.totalorder %s30, 0
      %p115 = por %p113, %p114
      %p116 = scmp.ne.s32.totalorder %s102, %s103
      %p117 = scmp.eq.s32.totalorder %s31, 1
      %p118 = por %p116, %p117
      %p120 = scmp.ne.s32.totalorder %s103, %s119
      %p121 = scmp.eq.s32.totalorder %s31, 0
      %p122 = por %p120, %p121
      %s123 = ssub.s32 %s33, %s40
      %p124 = scmp.eq.s32.totalorder %s123, 0
      %s126 = sadd.s32 %s125, 1
      %s127 = scalar_select %p124, %s125, %s126
      %p130 = pneg %p124
      %p131 = scmp.eq.s32.totalorder %s25, 1
      %p132 = por %p130, %p131
      %p133 = scmp.ne.s32.totalorder %s125, %s128
      %p134 = scmp.eq.s32.totalorder %s25, 0
      %p135 = por %p133, %p134
      %p136 = scmp.ne.s32.totalorder %s125, %s128
      %p137 = scmp.eq.s32.totalorder %s30, 1
      %p138 = por %p136, %p137
      %p139 = scmp.ne.s32.totalorder %s128, %s129
      %p140 = scmp.eq.s32.totalorder %s30, 0
      %p141 = por %p139, %p140
      %p142 = scmp.ne.s32.totalorder %s128, %s129
      %p143 = scmp.eq.s32.totalorder %s31, 1
      %p144 = por %p142, %p143
      %p146 = scmp.ne.s32.totalorder %s129, %s145
      %p147 = scmp.eq.s32.totalorder %s31, 0
      %p148 = por %p146, %p147
      %s149 = ssub.s32 %s33, %s40
      %p150 = scmp.eq.s32.totalorder %s149, 0
      %s152 = sadd.s32 %s151, 1
      %s153 = scalar_select %p150, %s151, %s152
      %p156 = pneg %p150
      %p157 = scmp.eq.s32.totalorder %s25, 1
      %p158 = por %p156, %p157
      %p159 = scmp.ne.s32.totalorder %s151, %s154
      %p160 = scmp.eq.s32.totalorder %s25, 0
      %p161 = por %p159, %p160
      %p162 = scmp.ne.s32.totalorder %s151, %s154
      %p163 = scmp.eq.s32.totalorder %s30, 1
      %p164 = por %p162, %p163
      %p165 = scmp.ne.s32.totalorder %s154, %s155
      %p166 = scmp.eq.s32.totalorder %s30, 0
      %p167 = por %p165, %p166
      %p168 = scmp.ne.s32.totalorder %s154, %s155
      %p169 = scmp.eq.s32.totalorder %s31, 1
      %p170 = por %p168, %p169
      %p172 = scmp.ne.s32.totalorder %s155, %s171
      %p173 = scmp.eq.s32.totalorder %s31, 0
      %p174 = por %p172, %p173
      %s175 = ssub.s32 %s33, %s40
      %p176 = scmp.eq.s32.totalorder %s175, 0
      %s178 = sadd.s32 %s177, 1
      %s179 = scalar_select %p176, %s177, %s178
      %p182 = pneg %p176
      %p183 = scmp.eq.s32.totalorder %s25, 1
      %p184 = por %p182, %p183
      %p185 = scmp.ne.s32.totalorder %s177, %s180
      %p186 = scmp.eq.s32.totalorder %s25, 0
      %p187 = por %p185, %p186
      %p188 = scmp.ne.s32.totalorder %s177, %s180
      %p189 = scmp.eq.s32.totalorder %s30, 1
      %p190 = por %p188, %p189
      %p191 = scmp.ne.s32.totalorder %s180, %s181
      %p192 = scmp.eq.s32.totalorder %s30, 0
      %p193 = por %p191, %p192
      %p194 = scmp.ne.s32.totalorder %s180, %s181
      %p195 = scmp.eq.s32.totalorder %s31, 1
      %p196 = por %p194, %p195
      %p198 = scmp.ne.s32.totalorder %s181, %s197
      %p199 = scmp.eq.s32.totalorder %s31, 0
      %p200 = por %p198, %p199
      %s201 = ssub.s32 %s33, %s40
      %p202 = scmp.eq.s32.totalorder %s201, 0
      %s204 = sadd.s32 %s203, 1
      %s205 = scalar_select %p202, %s203, %s204
      %p208 = pneg %p202
      %p209 = scmp.eq.s32.totalorder %s25, 1
      %p210 = por %p208, %p209
      %p211 = scmp.ne.s32.totalorder %s203, %s206
      %p212 = scmp.eq.s32.totalorder %s25, 0
      %p213 = por %p211, %p212
      %p214 = scmp.ne.s32.totalorder %s203, %s206
      %p215 = scmp.eq.s32.totalorder %s30, 1
      %p216 = por %p214, %p215
      %p217 = scmp.ne.s32.totalorder %s206, %s207
      %p218 = scmp.eq.s32.totalorder %s30, 0
      %p219 = por %p217, %p218
      %p220 = scmp.ne.s32.totalorder %s206, %s207
      %p221 = scmp.eq.s32.totalorder %s31, 1
      %p222 = por %p220, %p221
      %p224 = scmp.ne.s32.totalorder %s207, %s223
      %p225 = scmp.eq.s32.totalorder %s31, 0
      %p226 = por %p224, %p225
      %s227 = ssub.s32 %s33, %s40
      %p228 = scmp.eq.s32.totalorder %s227, 0
      %s230 = sadd.s32 %s229, 1
      %s231 = scalar_select %p228, %s229, %s230
      %p234 = pneg %p228
      %p235 = scmp.eq.s32.totalorder %s25, 1
      %p236 = por %p234, %p235
      %p237 = scmp.ne.s32.totalorder %s229, %s232
      %p238 = scmp.eq.s32.totalorder %s25, 0
      %p239 = por %p237, %p238
      %p240 = scmp.ne.s32.totalorder %s229, %s232
      %p241 = scmp.eq.s32.totalorder %s30, 1
      %p242 = por %p240, %p241
      %p243 = scmp.ne.s32.totalorder %s232, %s233
      %p244 = scmp.eq.s32.totalorder %s30, 0
      %p245 = por %p243, %p244
      %p246 = scmp.ne.s32.totalorder %s232, %s233
      %p247 = scmp.eq.s32.totalorder %s31, 1
      %p248 = por %p246, %p247
      %p250 = scmp.ne.s32.totalorder %s233, %s249
      %p251 = scmp.eq.s32.totalorder %s31, 0
      %p252 = por %p250, %p251
      %s253 = ssub.s32 %s33, %s40
      %p254 = scmp.eq.s32.totalorder %s253, 0
      %s256 = sadd.s32 %s255, 1
      %s257 = scalar_select %p254, %s255, %s256
      %p260 = pneg %p254
      %p261 = scmp.eq.s32.totalorder %s25, 1
      %p262 = por %p260, %p261
      %p263 = scmp.ne.s32.totalorder %s255, %s258
      %p264 = scmp.eq.s32.totalorder %s25, 0
      %p265 = por %p263, %p264
      %p266 = scmp.ne.s32.totalorder %s255, %s258
      %p267 = scmp.eq.s32.totalorder %s30, 1
      %p268 = por %p266, %p267
      %p269 = scmp.ne.s32.totalorder %s258, %s259
      %p270 = scmp.eq.s32.totalorder %s30, 0
      %p271 = por %p269, %p270
      %p272 = scmp.ne.s32.totalorder %s258, %s259
      %p273 = scmp.eq.s32.totalorder %s31, 1
      %p274 = por %p272, %p273
      %p276 = scmp.ne.s32.totalorder %s259, %s275
      %p277 = scmp.eq.s32.totalorder %s31, 0
      %p278 = por %p276, %p277
      %s279 = ssub.s32 %s33, %s40
      %p280 = scmp.eq.s32.totalorder %s279, 0
      %s282 = sadd.s32 %s281, 1
      %s283 = scalar_select %p280, %s281, %s282
      %p286 = pneg %p280
      %p287 = scmp.eq.s32.totalorder %s25, 1
      %p288 = por %p286, %p287
      %p289 = scmp.ne.s32.totalorder %s281, %s284
      %p290 = scmp.eq.s32.totalorder %s25, 0
      %p291 = por %p289, %p290
      %p292 = scmp.ne.s32.totalorder %s281, %s284
      %p293 = scmp.eq.s32.totalorder %s30, 1
      %p294 = por %p292, %p293
      %p295 = scmp.ne.s32.totalorder %s284, %s285
      %p296 = scmp.eq.s32.totalorder %s30, 0
      %p297 = por %p295, %p296
      %p298 = scmp.ne.s32.totalorder %s284, %s285
      %p299 = scmp.eq.s32.totalorder %s31, 1
      %p300 = por %p298, %p299
      %p302 = scmp.ne.s32.totalorder %s285, %s301
      %p303 = scmp.eq.s32.totalorder %s31, 0
      %p304 = por %p302, %p303
      %s305 = ssub.s32 %s33, %s40
      %p306 = scmp.eq.s32.totalorder %s305, 0
      %s308 = sadd.s32 %s307, 1
      %s309 = scalar_select %p306, %s307, %s308
      %p312 = pneg %p306
      %p313 = scmp.eq.s32.totalorder %s25, 1
      %p314 = por %p312, %p313
      %p315 = scmp.ne.s32.totalorder %s307, %s310
      %p316 = scmp.eq.s32.totalorder %s25, 0
      %p317 = por %p315, %p316
      %p318 = scmp.ne.s32.totalorder %s307, %s310
      %p319 = scmp.eq.s32.totalorder %s30, 1
      %p320 = por %p318, %p319
      %p321 = scmp.ne.s32.totalorder %s310, %s311
      %p322 = scmp.eq.s32.totalorder %s30, 0
      %p323 = por %p321, %p322
      %p324 = scmp.ne.s32.totalorder %s310, %s311
      %p325 = scmp.eq.s32.totalorder %s31, 1
      %p326 = por %p324, %p325
      %p328 = scmp.ne.s32.totalorder %s311, %s327
      %p329 = scmp.eq.s32.totalorder %s31, 0
      %p330 = por %p328, %p329
      %s331 = ssub.s32 %s33, %s40
      %p332 = scmp.eq.s32.totalorder %s331, 0
      %s334 = sadd.s32 %s333, 1
      %s335 = scalar_select %p332, %s333, %s334
      %p338 = pneg %p332
      %p339 = scmp.eq.s32.totalorder %s25, 1
      %p340 = por %p338, %p339
      %p341 = scmp.ne.s32.totalorder %s333, %s336
      %p342 = scmp.eq.s32.totalorder %s25, 0
      %p343 = por %p341, %p342
      %p344 = scmp.ne.s32.totalorder %s333, %s336
      %p345 = scmp.eq.s32.totalorder %s30, 1
      %p346 = por %p344, %p345
      %p347 = scmp.ne.s32.totalorder %s336, %s337
      %p348 = scmp.eq.s32.totalorder %s30, 0
      %p349 = por %p347, %p348
      %p350 = scmp.ne.s32.totalorder %s336, %s337
      %p351 = scmp.eq.s32.totalorder %s31, 1
      %p352 = por %p350, %p351
      %p354 = scmp.ne.s32.totalorder %s337, %s353
      %p355 = scmp.eq.s32.totalorder %s31, 0
      %p356 = por %p354, %p355
      %s357 = ssub.s32 %s33, %s40
      %p358 = scmp.eq.s32.totalorder %s357, 0
      %s360 = sadd.s32 %s359, 1
      %s361 = scalar_select %p358, %s359, %s360
      %p364 = pneg %p358
      %p365 = scmp.eq.s32.totalorder %s25, 1
      %p366 = por %p364, %p365
      %p367 = scmp.ne.s32.totalorder %s359, %s362
      %p368 = scmp.eq.s32.totalorder %s25, 0
      %p369 = por %p367, %p368
      %p370 = scmp.ne.s32.totalorder %s359, %s362
      %p371 = scmp.eq.s32.totalorder %s30, 1
      %p372 = por %p370, %p371
      %p373 = scmp.ne.s32.totalorder %s362, %s363
      %p374 = scmp.eq.s32.totalorder %s30, 0
      %p375 = por %p373, %p374
      %p376 = scmp.ne.s32.totalorder %s362, %s363
      %p377 = scmp.eq.s32.totalorder %s31, 1
      %p378 = por %p376, %p377
      %p380 = scmp.ne.s32.totalorder %s363, %s379
      %p381 = scmp.eq.s32.totalorder %s31, 0
      %p382 = por %p380, %p381
      %s383 = ssub.s32 %s33, %s40
      %p384 = scmp.eq.s32.totalorder %s383, 0
      %s386 = sadd.s32 %s385, 1
      %s387 = scalar_select %p384, %s385, %s386
      %p390 = pneg %p384
      %p391 = scmp.eq.s32.totalorder %s25, 1
      %p392 = por %p390, %p391
      %p393 = scmp.ne.s32.totalorder %s385, %s388
      %p394 = scmp.eq.s32.totalorder %s25, 0
      %p395 = por %p393, %p394
      %p396 = scmp.ne.s32.totalorder %s385, %s388
      %p397 = scmp.eq.s32.totalorder %s30, 1
      %p398 = por %p396, %p397
      %p399 = scmp.ne.s32.totalorder %s388, %s389
      %p400 = scmp.eq.s32.totalorder %s30, 0
      %p401 = por %p399, %p400
      %p402 = scmp.ne.s32.totalorder %s388, %s389
      %p403 = scmp.eq.s32.totalorder %s31, 1
      %p404 = por %p402, %p403
      %p406 = scmp.ne.s32.totalorder %s389, %s405
      %p407 = scmp.eq.s32.totalorder %s31, 0
      %p408 = por %p406, %p407
      %s409 = ssub.s32 %s33, %s40
      %p410 = scmp.eq.s32.totalorder %s409, 0
      %s412 = sadd.s32 %s411, 1
      %s413 = scalar_select %p410, %s411, %s412
      %p416 = pneg %p410
      %p417 = scmp.eq.s32.totalorder %s25, 1
      %p418 = por %p416, %p417
      %p419 = scmp.ne.s32.totalorder %s411, %s414
      %p420 = scmp.eq.s32.totalorder %s25, 0
      %p421 = por %p419, %p420
      %p422 = scmp.ne.s32.totalorder %s411, %s414
      %p423 = scmp.eq.s32.totalorder %s30, 1
      %p424 = por %p422, %p423
      %p425 = scmp.ne.s32.totalorder %s414, %s415
      %p426 = scmp.eq.s32.totalorder %s30, 0
      %p427 = por %p425, %p426
      %p428 = scmp.ne.s32.totalorder %s414, %s415
      %p429 = scmp.eq.s32.totalorder %s31, 1
      %p430 = por %p428, %p429
      %p432 = scmp.ne.s32.totalorder %s415, %s431
      %p433 = scmp.eq.s32.totalorder %s31, 0
      %p434 = por %p432, %p433
      %s435 = ssub.s32 %s33, %s40
      %p436 = scmp.eq.s32.totalorder %s435, 0
      %s438 = sadd.s32 %s437, 1
      %s439 = scalar_select %p436, %s437, %s438
      %p442 = pneg %p436
      %p443 = scmp.eq.s32.totalorder %s25, 1
      %p444 = por %p442, %p443
      %p445 = scmp.ne.s32.totalorder %s437, %s440
      %p446 = scmp.eq.s32.totalorder %s25, 0
      %p447 = por %p445, %p446
      %p448 = scmp.ne.s32.totalorder %s437, %s440
      %p449 = scmp.eq.s32.totalorder %s30, 1
      %p450 = por %p448, %p449
      %p451 = scmp.ne.s32.totalorder %s440, %s441
      %p452 = scmp.eq.s32.totalorder %s30, 0
      %p453 = por %p451, %p452
      %p454 = scmp.ne.s32.totalorder %s440, %s441
      %p455 = scmp.eq.s32.totalorder %s31, 1
      %p456 = por %p454, %p455
      %p458 = scmp.ne.s32.totalorder %s441, %s457
      %p459 = scmp.eq.s32.totalorder %s31, 0
      %p460 = por %p458, %p459
      %s461 = ssub.s32 %s32, %s44
      %p462 = scmp.eq.s32.totalorder %s461, 0
      %s464 = sadd.s32 %s463, 1
      %s465 = scalar_select %p462, %s463, %s464
      %p468 = pneg %p462
      %p469 = scmp.eq.s32.totalorder %s25, 1
      %p470 = por %p468, %p469
      %p471 = scmp.ne.s32.totalorder %s463, %s466
      %p472 = scmp.eq.s32.totalorder %s25, 0
      %p473 = por %p471, %p472
      %p474 = scmp.ne.s32.totalorder %s463, %s466
      %p475 = scmp.eq.s32.totalorder %s30, 1
      %p476 = por %p474, %p475
      %p477 = scmp.ne.s32.totalorder %s466, %s467
      %p478 = scmp.eq.s32.totalorder %s30, 0
      %p479 = por %p477, %p478
      %p480 = scmp.ne.s32.totalorder %s466, %s467
      %p481 = scmp.eq.s32.totalorder %s31, 1
      %p482 = por %p480, %p481
      %p484 = scmp.ne.s32.totalorder %s467, %s483
      %p485 = scmp.eq.s32.totalorder %s31, 0
      %p486 = por %p484, %p485
      %p487 = scmp.le.s32.totalorder 1, %s25
      %p488 = scmp.lt.s32.totalorder %s25, 3
      %p489 = pnand %p487, %p488
      %p490 = pneg %p489
      // Predicated region
      $region9: #{tpu_custom_call.1} parent=5 // pred_check
        _
      $region10: #{tpu_custom_call.1} parent=5 // pred_check_branch
        %492 = sbr.rel (%p489) target = $region12
      $region11: #{tpu_custom_call.1} parent=5 // pred_region
        %s493 = ssub.s32 %s25, 1
        // Predicated region
        $region13: #{tpu_custom_call.1} parent=11 // pred_check
          %p494 = pneg %p63
        $region14: #{tpu_custom_call.1} parent=11 // pred_check_branch
          %496 = sbr.rel (%p494) target = $region16
        $region15: #{tpu_custom_call.1} parent=11 // pred_region
          %s497 = smul.u32 2, %s34
          %s499 = ssub.s32 256, 256
          %500 = vsyncadd [#allocation5], %s499
          %s501 = smul.addr %s497, 128
          %s502 = scalar_lea.hbm %s0, %s501
          %s503 = sshll.u32 [#allocation4], 4
          %s504 = int_to_ptr.vmem [resolvable:$true] %s503
          %509 = dma.hbm_to_vmem [thread:$0]  %s502, 256, %s504, [#allocation5], 128, 128, 8
        $region16: #{tpu_custom_call.1} parent=11 // pred_fallthru
          _
        // Predicated region
        $region17: #{tpu_custom_call.1} parent=11 // pred_check
          %p510 = pneg %p89
        $region18: #{tpu_custom_call.1} parent=11 // pred_check_branch
          %512 = sbr.rel (%p510) target = $region20
        $region19: #{tpu_custom_call.1} parent=11 // pred_region
          %s513 = smul.u32 2, %s34
          %s515 = ssub.s32 256, 256
          %516 = vsyncadd [#allocation8], %s515
          %s517 = smul.addr %s513, 128
          %s518 = scalar_lea.hbm %s1, %s517
          %s519 = sshll.u32 [#allocation7], 4
          %s520 = int_to_ptr.vmem [resolvable:$true] %s519
          %525 = dma.hbm_to_vmem [thread:$0]  %s518, 256, %s520, [#allocation8], 128, 128, 8
        $region20: #{tpu_custom_call.1} parent=11 // pred_fallthru
          _
      $region12: #{tpu_custom_call.1} parent=5 // pred_fallthru
        _
      %p526 = scmp.lt.s32.totalorder %s25, 2
      // Predicated region
      $region21: #{tpu_custom_call.1} parent=5 // pred_check
        %p527 = pneg %p526
      $region22: #{tpu_custom_call.1} parent=5 // pred_check_branch
        %529 = sbr.rel (%p527) target = $region24
      $region23: #{tpu_custom_call.1} parent=5 // pred_region
        // Predicated region
        $region25: #{tpu_custom_call.1} parent=23 // pred_check
          %p530 = pneg %p109
        $region26: #{tpu_custom_call.1} parent=23 // pred_check_branch
          %532 = sbr.rel (%p530) target = $region28
        $region27: #{tpu_custom_call.1} parent=23 // pred_region
          %s533 = sand.u32 %s25, 1
          %s534 = scalar_lea.sflag [#allocation5], %s533
          %s535 = sand.u32 %s99, 1
          %s536 = smul.addr %s535, 16
          %s537 = scalar_lea.vmem [#allocation9], %s536
          %s539 = ssub.s32 256, 256
          %540 = vsyncadd %s534, %s539
          %s541 = smul.addr %s33, 4
          %s542 = smul.addr %s541, 64
          %s543 = scalar_lea.hbm %s2, %s542
          %s544 = sshll.u32 %s537, 4
          %s545 = int_to_ptr.vmem [resolvable:$true] %s544
          %550 = dma.hbm_to_vmem [thread:$0]  %s543, 256, %s545, %s534, 64, 64, 4
        $region28: #{tpu_custom_call.1} parent=23 // pred_fallthru
          _
        // Predicated region
        $region29: #{tpu_custom_call.1} parent=23 // pred_check
          %p551 = pneg %p135
        $region30: #{tpu_custom_call.1} parent=23 // pred_check_branch
          %553 = sbr.rel (%p551) target = $region32
        $region31: #{tpu_custom_call.1} parent=23 // pred_region
          %s554 = sand.u32 %s25, 1
          %s555 = scalar_lea.sflag [#allocation5], %s554
          %s556 = sand.u32 %s125, 1
          %s557 = scalar_lea.vmem [#allocation10], %s556
          %s559 = ssub.s32 16, 16
          %560 = vsyncadd %s555, %s559
          %s561 = smul.addr %s33, 16
          %s562 = scalar_lea.hbm %s3, %s561
          %s564 = sshll.u32 %s557, 4
          %s565 = int_to_ptr.vmem [resolvable:$true] %s564
          %567 = dma.hbm_to_vmem [thread:$0]  %s562, 16, %s565, %s555
        $region32: #{tpu_custom_call.1} parent=23 // pred_fallthru
          _
        // Predicated region
        $region33: #{tpu_custom_call.1} parent=23 // pred_check
          %p568 = pneg %p161
        $region34: #{tpu_custom_call.1} parent=23 // pred_check_branch
          %570 = sbr.rel (%p568) target = $region36
        $region35: #{tpu_custom_call.1} parent=23 // pred_region
          %s571 = sand.u32 %s25, 1
          %s572 = scalar_lea.sflag [#allocation5], %s571
          %s573 = sand.u32 %s151, 1
          %s574 = smul.addr %s573, 16
          %s575 = scalar_lea.vmem [#allocation11], %s574
          %s577 = ssub.s32 256, 256
          %578 = vsyncadd %s572, %s577
          %s579 = smul.addr %s33, 4
          %s580 = smul.addr %s579, 64
          %s581 = scalar_lea.hbm %s4, %s580
          %s582 = sshll.u32 %s575, 4
          %s583 = int_to_ptr.vmem [resolvable:$true] %s582
          %588 = dma.hbm_to_vmem [thread:$0]  %s581, 256, %s583, %s572, 64, 64, 4
        $region36: #{tpu_custom_call.1} parent=23 // pred_fallthru
          _
        // Predicated region
        $region37: #{tpu_custom_call.1} parent=23 // pred_check
          %p589 = pneg %p187
        $region38: #{tpu_custom_call.1} parent=23 // pred_check_branch
          %591 = sbr.rel (%p589) target = $region40
        $region39: #{tpu_custom_call.1} parent=23 // pred_region
          %s592 = sand.u32 %s25, 1
          %s593 = scalar_lea.sflag [#allocation5], %s592
          %s594 = sand.u32 %s177, 1
          %s595 = scalar_lea.vmem [#allocation12], %s594
          %s597 = ssub.s32 16, 16
          %598 = vsyncadd %s593, %s597
          %s599 = smul.addr %s33, 16
          %s600 = scalar_lea.hbm %s5, %s599
          %s602 = sshll.u32 %s595, 4
          %s603 = int_to_ptr.vmem [resolvable:$true] %s602
          %605 = dma.hbm_to_vmem [thread:$0]  %s600, 16, %s603, %s593
        $region40: #{tpu_custom_call.1} parent=23 // pred_fallthru
          _
        // Predicated region
        $region41: #{tpu_custom_call.1} parent=23 // pred_check
          %p606 = pneg %p213
        $region42: #{tpu_custom_call.1} parent=23 // pred_check_branch
          %608 = sbr.rel (%p606) target = $region44
        $region43: #{tpu_custom_call.1} parent=23 // pred_region
          %s609 = sand.u32 %s25, 1
          %s610 = scalar_lea.sflag [#allocation5], %s609
          %s611 = sand.u32 %s203, 1
          %s612 = smul.addr %s611, 16
          %s613 = scalar_lea.vmem [#allocation13], %s612
          %s615 = ssub.s32 256, 256
          %616 = vsyncadd %s610, %s615
          %s617 = smul.addr %s33, 4
          %s618 = smul.addr %s617, 64
          %s619 = scalar_lea.hbm %s6, %s618
          %s620 = sshll.u32 %s613, 4
          %s621 = int_to_ptr.vmem [resolvable:$true] %s620
          %626 = dma.hbm_to_vmem [thread:$0]  %s619, 256, %s621, %s610, 64, 64, 4
        $region44: #{tpu_custom_call.1} parent=23 // pred_fallthru
          _
        // Predicated region
        $region45: #{tpu_custom_call.1} parent=23 // pred_check
          %p627 = pneg %p239
        $region46: #{tpu_custom_call.1} parent=23 // pred_check_branch
          %629 = sbr.rel (%p627) target = $region48
        $region47: #{tpu_custom_call.1} parent=23 // pred_region
          %s630 = sand.u32 %s25, 1
          %s631 = scalar_lea.sflag [#allocation5], %s630
          %s632 = sand.u32 %s229, 1
          %s633 = scalar_lea.vmem [#allocation14], %s632
          %s635 = ssub.s32 16, 16
          %636 = vsyncadd %s631, %s635
          %s637 = smul.addr %s33, 16
          %s638 = scalar_lea.hbm %s7, %s637
          %s640 = sshll.u32 %s633, 4
          %s641 = int_to_ptr.vmem [resolvable:$true] %s640
          %643 = dma.hbm_to_vmem [thread:$0]  %s638, 16, %s641, %s631
        $region48: #{tpu_custom_call.1} parent=23 // pred_fallthru
          _
        // Predicated region
        $region49: #{tpu_custom_call.1} parent=23 // pred_check
          %p644 = pneg %p265
        $region50: #{tpu_custom_call.1} parent=23 // pred_check_branch
          %646 = sbr.rel (%p644) target = $region52
        $region51: #{tpu_custom_call.1} parent=23 // pred_region
          %s647 = sand.u32 %s25, 1
          %s648 = scalar_lea.sflag [#allocation5], %s647
          %s649 = sand.u32 %s255, 1
          %s650 = scalar_lea.vmem [#allocation15], %s649
          %s652 = ssub.s32 16, 16
          %653 = vsyncadd %s648, %s652
          %s654 = smul.addr %s33, 16
          %s655 = scalar_lea.hbm %s8, %s654
          %s657 = sshll.u32 %s650, 4
          %s658 = int_to_ptr.vmem [resolvable:$true] %s657
          %660 = dma.hbm_to_vmem [thread:$0]  %s655, 16, %s658, %s648
        $region52: #{tpu_custom_call.1} parent=23 // pred_fallthru
          _
        // Predicated region
        $region53: #{tpu_custom_call.1} parent=23 // pred_check
          %p661 = pneg %p291
        $region54: #{tpu_custom_call.1} parent=23 // pred_check_branch
          %663 = sbr.rel (%p661) target = $region56
        $region55: #{tpu_custom_call.1} parent=23 // pred_region
          %s664 = sand.u32 %s25, 1
          %s665 = scalar_lea.sflag [#allocation5], %s664
          %s666 = sand.u32 %s281, 1
          %s667 = scalar_lea.vmem [#allocation16], %s666
          %s669 = ssub.s32 16, 16
          %670 = vsyncadd %s665, %s669
          %s671 = smul.addr %s33, 16
          %s672 = scalar_lea.hbm %s9, %s671
          %s674 = sshll.u32 %s667, 4
          %s675 = int_to_ptr.vmem [resolvable:$true] %s674
          %677 = dma.hbm_to_vmem [thread:$0]  %s672, 16, %s675, %s665
        $region56: #{tpu_custom_call.1} parent=23 // pred_fallthru
          _
        // Predicated region
        $region57: #{tpu_custom_call.1} parent=23 // pred_check
          %p678 = pneg %p317
        $region58: #{tpu_custom_call.1} parent=23 // pred_check_branch
          %680 = sbr.rel (%p678) target = $region60
        $region59: #{tpu_custom_call.1} parent=23 // pred_region
          %s681 = sand.u32 %s25, 1
          %s682 = scalar_lea.sflag [#allocation5], %s681
          %s683 = sand.u32 %s307, 1
          %s684 = smul.addr %s683, 16
          %s685 = scalar_lea.vmem [#allocation17], %s684
          %s687 = ssub.s32 256, 256
          %688 = vsyncadd %s682, %s687
          %s689 = smul.addr %s33, 4
          %s690 = smul.addr %s689, 64
          %s691 = scalar_lea.hbm %s10, %s690
          %s692 = sshll.u32 %s685, 4
          %s693 = int_to_ptr.vmem [resolvable:$true] %s692
          %698 = dma.hbm_to_vmem [thread:$0]  %s691, 256, %s693, %s682, 64, 64, 4
        $region60: #{tpu_custom_call.1} parent=23 // pred_fallthru
          _
        // Predicated region
        $region61: #{tpu_custom_call.1} parent=23 // pred_check
          %p699 = pneg %p343
        $region62: #{tpu_custom_call.1} parent=23 // pred_check_branch
          %701 = sbr.rel (%p699) target = $region64
        $region63: #{tpu_custom_call.1} parent=23 // pred_region
          %s702 = sand.u32 %s25, 1
          %s703 = scalar_lea.sflag [#allocation5], %s702
          %s704 = sand.u32 %s333, 1
          %s705 = scalar_lea.vmem [#allocation18], %s704
          %s707 = ssub.s32 16, 16
          %708 = vsyncadd %s703, %s707
          %s709 = smul.addr %s33, 16
          %s710 = scalar_lea.hbm %s11, %s709
          %s712 = sshll.u32 %s705, 4
          %s713 = int_to_ptr.vmem [resolvable:$true] %s712
          %715 = dma.hbm_to_vmem [thread:$0]  %s710, 16, %s713, %s703
        $region64: #{tpu_custom_call.1} parent=23 // pred_fallthru
          _
        // Predicated region
        $region65: #{tpu_custom_call.1} parent=23 // pred_check
          %p716 = pneg %p369
        $region66: #{tpu_custom_call.1} parent=23 // pred_check_branch
          %718 = sbr.rel (%p716) target = $region68
        $region67: #{tpu_custom_call.1} parent=23 // pred_region
          %s719 = sand.u32 %s25, 1
          %s720 = scalar_lea.sflag [#allocation5], %s719
          %s721 = sand.u32 %s359, 1
          %s722 = smul.addr %s721, 32
          %s723 = scalar_lea.vmem [#allocation19], %s722
          %s725 = ssub.s32 512, 512
          %726 = vsyncadd %s720, %s725
          %s727 = smul.addr %s33, 8
          %s728 = smul.addr %s727, 64
          %s729 = scalar_lea.hbm %s12, %s728
          %s730 = sshll.u32 %s723, 4
          %s731 = int_to_ptr.vmem [resolvable:$true] %s730
          %736 = dma.hbm_to_vmem [thread:$0]  %s729, 512, %s731, %s720, 64, 64, 4
        $region68: #{tpu_custom_call.1} parent=23 // pred_fallthru
          _
        // Predicated region
        $region69: #{tpu_custom_call.1} parent=23 // pred_check
          %p737 = pneg %p395
        $region70: #{tpu_custom_call.1} parent=23 // pred_check_branch
          %739 = sbr.rel (%p737) target = $region72
        $region71: #{tpu_custom_call.1} parent=23 // pred_region
          %s740 = sand.u32 %s25, 1
          %s741 = scalar_lea.sflag [#allocation5], %s740
          %s742 = sand.u32 %s385, 1
          %s743 = scalar_lea.vmem [#allocation20], %s742
          %s745 = ssub.s32 16, 16
          %746 = vsyncadd %s741, %s745
          %s747 = smul.addr %s33, 16
          %s748 = scalar_lea.hbm %s13, %s747
          %s750 = sshll.u32 %s743, 4
          %s751 = int_to_ptr.vmem [resolvable:$true] %s750
          %753 = dma.hbm_to_vmem [thread:$0]  %s748, 16, %s751, %s741
        $region72: #{tpu_custom_call.1} parent=23 // pred_fallthru
          _
        // Predicated region
        $region73: #{tpu_custom_call.1} parent=23 // pred_check
          %p754 = pneg %p421
        $region74: #{tpu_custom_call.1} parent=23 // pred_check_branch
          %756 = sbr.rel (%p754) target = $region76
        $region75: #{tpu_custom_call.1} parent=23 // pred_region
          %s757 = sand.u32 %s25, 1
          %s758 = scalar_lea.sflag [#allocation5], %s757
          %s759 = sand.u32 %s411, 1
          %s760 = scalar_lea.vmem [#allocation21], %s759
          %s762 = ssub.s32 16, 16
          %763 = vsyncadd %s758, %s762
          %s764 = smul.addr %s33, 16
          %s765 = scalar_lea.hbm %s14, %s764
          %s767 = sshll.u32 %s760, 4
          %s768 = int_to_ptr.vmem [resolvable:$true] %s767
          %770 = dma.hbm_to_vmem [thread:$0]  %s765, 16, %s768, %s758
        $region76: #{tpu_custom_call.1} parent=23 // pred_fallthru
          _
        // Predicated region
        $region77: #{tpu_custom_call.1} parent=23 // pred_check
          %p771 = pneg %p447
        $region78: #{tpu_custom_call.1} parent=23 // pred_check_branch
          %773 = sbr.rel (%p771) target = $region80
        $region79: #{tpu_custom_call.1} parent=23 // pred_region
          %s774 = sand.u32 %s25, 1
          %s775 = scalar_lea.sflag [#allocation5], %s774
          %s776 = sand.u32 %s437, 1
          %s777 = scalar_lea.vmem [#allocation22], %s776
          %s779 = ssub.s32 16, 16
          %780 = vsyncadd %s775, %s779
          %s781 = smul.addr %s33, 16
          %s782 = scalar_lea.hbm %s15, %s781
          %s784 = sshll.u32 %s777, 4
          %s785 = int_to_ptr.vmem [resolvable:$true] %s784
          %787 = dma.hbm_to_vmem [thread:$0]  %s782, 16, %s785, %s775
        $region80: #{tpu_custom_call.1} parent=23 // pred_fallthru
          _
      $region24: #{tpu_custom_call.1} parent=5 // pred_fallthru
        _
      %p788 = scmp.le.s32.totalorder 1, %s25
      %p789 = scmp.lt.s32.totalorder %s25, 3
      %p790 = pnand %p788, %p789
      %p791 = pneg %p790
      // Predicated region
      $region81: #{tpu_custom_call.1} parent=5 // pred_check
        _
      $region82: #{tpu_custom_call.1} parent=5 // pred_check_branch
        %793 = sbr.rel (%p790) target = $region84
      $region83: #{tpu_custom_call.1} parent=5 // pred_region
        %s794 = ssub.s32 %s25, 1
        // Predicated region
        $region85: #{tpu_custom_call.1} parent=83 // pred_check
          %p795 = pneg %p63
        $region86: #{tpu_custom_call.1} parent=83 // pred_check_branch
          %797 = sbr.rel (%p795) target = $region88
        $region87: #{tpu_custom_call.1} parent=83 // pred_region
          %798 = dma.done [#allocation5], 256
        $region88: #{tpu_custom_call.1} parent=83 // pred_fallthru
          _
        // Predicated region
        $region89: #{tpu_custom_call.1} parent=83 // pred_check
          %p799 = pneg %p89
        $region90: #{tpu_custom_call.1} parent=83 // pred_check_branch
          %801 = sbr.rel (%p799) target = $region92
        $region91: #{tpu_custom_call.1} parent=83 // pred_region
          %802 = dma.done [#allocation8], 256
        $region92: #{tpu_custom_call.1} parent=83 // pred_fallthru
          _
        %s803 = sand.u32 %s30, 1
        %s804 = scalar_lea.sflag [#allocation5], %s803
        %s805 = sand.u32 %s102, 1
        %s806 = smul.addr %s805, 16
        %s807 = scalar_lea.vmem [#allocation9], %s806
        // Predicated region
        $region93: #{tpu_custom_call.1} parent=83 // pred_check
          %p808 = pneg %p115
        $region94: #{tpu_custom_call.1} parent=83 // pred_check_branch
          %810 = sbr.rel (%p808) target = $region96
        $region95: #{tpu_custom_call.1} parent=83 // pred_region
          %811 = dma.done %s804, 256
        $region96: #{tpu_custom_call.1} parent=83 // pred_fallthru
          _
        %s812 = sand.u32 %s30, 1
        %s813 = scalar_lea.sflag [#allocation5], %s812
        %s814 = sand.u32 %s128, 1
        %s815 = scalar_lea.vmem [#allocation10], %s814
        // Predicated region
        $region97: #{tpu_custom_call.1} parent=83 // pred_check
          %p816 = pneg %p141
        $region98: #{tpu_custom_call.1} parent=83 // pred_check_branch
          %818 = sbr.rel (%p816) target = $region100
        $region99: #{tpu_custom_call.1} parent=83 // pred_region
          %819 = dma.done %s813, 16
        $region100: #{tpu_custom_call.1} parent=83 // pred_fallthru
          _
        %s820 = sand.u32 %s30, 1
        %s821 = scalar_lea.sflag [#allocation5], %s820
        %s822 = sand.u32 %s154, 1
        %s823 = smul.addr %s822, 16
        %s824 = scalar_lea.vmem [#allocation11], %s823
        // Predicated region
        $region101: #{tpu_custom_call.1} parent=83 // pred_check
          %p825 = pneg %p167
        $region102: #{tpu_custom_call.1} parent=83 // pred_check_branch
          %827 = sbr.rel (%p825) target = $region104
        $region103: #{tpu_custom_call.1} parent=83 // pred_region
          %828 = dma.done %s821, 256
        $region104: #{tpu_custom_call.1} parent=83 // pred_fallthru
          _
        %s829 = sand.u32 %s30, 1
        %s830 = scalar_lea.sflag [#allocation5], %s829
        %s831 = sand.u32 %s180, 1
        %s832 = scalar_lea.vmem [#allocation12], %s831
        // Predicated region
        $region105: #{tpu_custom_call.1} parent=83 // pred_check
          %p833 = pneg %p193
        $region106: #{tpu_custom_call.1} parent=83 // pred_check_branch
          %835 = sbr.rel (%p833) target = $region108
        $region107: #{tpu_custom_call.1} parent=83 // pred_region
          %836 = dma.done %s830, 16
        $region108: #{tpu_custom_call.1} parent=83 // pred_fallthru
          _
        %s837 = sand.u32 %s30, 1
        %s838 = scalar_lea.sflag [#allocation5], %s837
        %s839 = sand.u32 %s206, 1
        %s840 = smul.addr %s839, 16
        %s841 = scalar_lea.vmem [#allocation13], %s840
        // Predicated region
        $region109: #{tpu_custom_call.1} parent=83 // pred_check
          %p842 = pneg %p219
        $region110: #{tpu_custom_call.1} parent=83 // pred_check_branch
          %844 = sbr.rel (%p842) target = $region112
        $region111: #{tpu_custom_call.1} parent=83 // pred_region
          %845 = dma.done %s838, 256
        $region112: #{tpu_custom_call.1} parent=83 // pred_fallthru
          _
        %s846 = sand.u32 %s30, 1
        %s847 = scalar_lea.sflag [#allocation5], %s846
        %s848 = sand.u32 %s232, 1
        %s849 = scalar_lea.vmem [#allocation14], %s848
        // Predicated region
        $region113: #{tpu_custom_call.1} parent=83 // pred_check
          %p850 = pneg %p245
        $region114: #{tpu_custom_call.1} parent=83 // pred_check_branch
          %852 = sbr.rel (%p850) target = $region116
        $region115: #{tpu_custom_call.1} parent=83 // pred_region
          %853 = dma.done %s847, 16
        $region116: #{tpu_custom_call.1} parent=83 // pred_fallthru
          _
        %s854 = sand.u32 %s30, 1
        %s855 = scalar_lea.sflag [#allocation5], %s854
        %s856 = sand.u32 %s258, 1
        %s857 = scalar_lea.vmem [#allocation15], %s856
        // Predicated region
        $region117: #{tpu_custom_call.1} parent=83 // pred_check
          %p858 = pneg %p271
        $region118: #{tpu_custom_call.1} parent=83 // pred_check_branch
          %860 = sbr.rel (%p858) target = $region120
        $region119: #{tpu_custom_call.1} parent=83 // pred_region
          %861 = dma.done %s855, 16
        $region120: #{tpu_custom_call.1} parent=83 // pred_fallthru
          _
        %s862 = sand.u32 %s30, 1
        %s863 = scalar_lea.sflag [#allocation5], %s862
        %s864 = sand.u32 %s284, 1
        %s865 = scalar_lea.vmem [#allocation16], %s864
        // Predicated region
        $region121: #{tpu_custom_call.1} parent=83 // pred_check
          %p866 = pneg %p297
        $region122: #{tpu_custom_call.1} parent=83 // pred_check_branch
          %868 = sbr.rel (%p866) target = $region124
        $region123: #{tpu_custom_call.1} parent=83 // pred_region
          %869 = dma.done %s863, 16
        $region124: #{tpu_custom_call.1} parent=83 // pred_fallthru
          _
        %s870 = sand.u32 %s30, 1
        %s871 = scalar_lea.sflag [#allocation5], %s870
        %s872 = sand.u32 %s310, 1
        %s873 = smul.addr %s872, 16
        %s874 = scalar_lea.vmem [#allocation17], %s873
        // Predicated region
        $region125: #{tpu_custom_call.1} parent=83 // pred_check
          %p875 = pneg %p323
        $region126: #{tpu_custom_call.1} parent=83 // pred_check_branch
          %877 = sbr.rel (%p875) target = $region128
        $region127: #{tpu_custom_call.1} parent=83 // pred_region
          %878 = dma.done %s871, 256
        $region128: #{tpu_custom_call.1} parent=83 // pred_fallthru
          _
        %s879 = sand.u32 %s30, 1
        %s880 = scalar_lea.sflag [#allocation5], %s879
        %s881 = sand.u32 %s336, 1
        %s882 = scalar_lea.vmem [#allocation18], %s881
        // Predicated region
        $region129: #{tpu_custom_call.1} parent=83 // pred_check
          %p883 = pneg %p349
        $region130: #{tpu_custom_call.1} parent=83 // pred_check_branch
          %885 = sbr.rel (%p883) target = $region132
        $region131: #{tpu_custom_call.1} parent=83 // pred_region
          %886 = dma.done %s880, 16
        $region132: #{tpu_custom_call.1} parent=83 // pred_fallthru
          _
        %s887 = sand.u32 %s30, 1
        %s888 = scalar_lea.sflag [#allocation5], %s887
        %s889 = sand.u32 %s362, 1
        %s890 = smul.addr %s889, 32
        %s891 = scalar_lea.vmem [#allocation19], %s890
        // Predicated region
        $region133: #{tpu_custom_call.1} parent=83 // pred_check
          %p892 = pneg %p375
        $region134: #{tpu_custom_call.1} parent=83 // pred_check_branch
          %894 = sbr.rel (%p892) target = $region136
        $region135: #{tpu_custom_call.1} parent=83 // pred_region
          %895 = dma.done %s888, 512
        $region136: #{tpu_custom_call.1} parent=83 // pred_fallthru
          _
        %s896 = sand.u32 %s30, 1
        %s897 = scalar_lea.sflag [#allocation5], %s896
        %s898 = sand.u32 %s388, 1
        %s899 = scalar_lea.vmem [#allocation20], %s898
        // Predicated region
        $region137: #{tpu_custom_call.1} parent=83 // pred_check
          %p900 = pneg %p401
        $region138: #{tpu_custom_call.1} parent=83 // pred_check_branch
          %902 = sbr.rel (%p900) target = $region140
        $region139: #{tpu_custom_call.1} parent=83 // pred_region
          %903 = dma.done %s897, 16
        $region140: #{tpu_custom_call.1} parent=83 // pred_fallthru
          _
        %s904 = sand.u32 %s30, 1
        %s905 = scalar_lea.sflag [#allocation5], %s904
        %s906 = sand.u32 %s414, 1
        %s907 = scalar_lea.vmem [#allocation21], %s906
        // Predicated region
        $region141: #{tpu_custom_call.1} parent=83 // pred_check
          %p908 = pneg %p427
        $region142: #{tpu_custom_call.1} parent=83 // pred_check_branch
          %910 = sbr.rel (%p908) target = $region144
        $region143: #{tpu_custom_call.1} parent=83 // pred_region
          %911 = dma.done %s905, 16
        $region144: #{tpu_custom_call.1} parent=83 // pred_fallthru
          _
        %s912 = sand.u32 %s30, 1
        %s913 = scalar_lea.sflag [#allocation5], %s912
        %s914 = sand.u32 %s440, 1
        %s915 = scalar_lea.vmem [#allocation22], %s914
        // Predicated region
        $region145: #{tpu_custom_call.1} parent=83 // pred_check
          %p916 = pneg %p453
        $region146: #{tpu_custom_call.1} parent=83 // pred_check_branch
          %918 = sbr.rel (%p916) target = $region148
        $region147: #{tpu_custom_call.1} parent=83 // pred_region
          %919 = dma.done %s913, 16
        $region148: #{tpu_custom_call.1} parent=83 // pred_fallthru
          _
        %p920 = pneg %p63
        %p921 = pneg %p60
        %p922 = pneg %p89
        %p923 = pneg %p86
        %s924 = sand.u32 %s30, 1
        %s925 = scalar_lea.sflag [#allocation5], %s924
        %s926 = sand.u32 %s102, 1
        %s927 = smul.addr %s926, 16
        %s928 = scalar_lea.vmem [#allocation9], %s927
        %p929 = pneg %p115
        %p930 = pneg %p112
        %s931 = sand.u32 %s30, 1
        %s932 = scalar_lea.sflag [#allocation5], %s931
        %s933 = sand.u32 %s128, 1
        %s934 = scalar_lea.vmem [#allocation10], %s933
        %p935 = pneg %p141
        %p936 = pneg %p138
        %s937 = sand.u32 %s30, 1
        %s938 = scalar_lea.sflag [#allocation5], %s937
        %s939 = sand.u32 %s154, 1
        %s940 = smul.addr %s939, 16
        %s941 = scalar_lea.vmem [#allocation11], %s940
        %p942 = pneg %p167
        %p943 = pneg %p164
        %s944 = sand.u32 %s30, 1
        %s945 = scalar_lea.sflag [#allocation5], %s944
        %s946 = sand.u32 %s180, 1
        %s947 = scalar_lea.vmem [#allocation12], %s946
        %p948 = pneg %p193
        %p949 = pneg %p190
        %s950 = sand.u32 %s30, 1
        %s951 = scalar_lea.sflag [#allocation5], %s950
        %s952 = sand.u32 %s206, 1
        %s953 = smul.addr %s952, 16
        %s954 = scalar_lea.vmem [#allocation13], %s953
        %p955 = pneg %p219
        %p956 = pneg %p216
        %s957 = sand.u32 %s30, 1
        %s958 = scalar_lea.sflag [#allocation5], %s957
        %s959 = sand.u32 %s232, 1
        %s960 = scalar_lea.vmem [#allocation14], %s959
        %p961 = pneg %p245
        %p962 = pneg %p242
        %s963 = sand.u32 %s30, 1
        %s964 = scalar_lea.sflag [#allocation5], %s963
        %s965 = sand.u32 %s258, 1
        %s966 = scalar_lea.vmem [#allocation15], %s965
        %p967 = pneg %p271
        %p968 = pneg %p268
        %s969 = sand.u32 %s30, 1
        %s970 = scalar_lea.sflag [#allocation5], %s969
        %s971 = sand.u32 %s284, 1
        %s972 = scalar_lea.vmem [#allocation16], %s971
        %p973 = pneg %p297
        %p974 = pneg %p294
        %s975 = sand.u32 %s30, 1
        %s976 = scalar_lea.sflag [#allocation5], %s975
        %s977 = sand.u32 %s310, 1
        %s978 = smul.addr %s977, 16
        %s979 = scalar_lea.vmem [#allocation17], %s978
        %p980 = pneg %p323
        %p981 = pneg %p320
        %s982 = sand.u32 %s30, 1
        %s983 = scalar_lea.sflag [#allocation5], %s982
        %s984 = sand.u32 %s336, 1
        %s985 = scalar_lea.vmem [#allocation18], %s984
        %p986 = pneg %p349
        %p987 = pneg %p346
        %s988 = sand.u32 %s30, 1
        %s989 = scalar_lea.sflag [#allocation5], %s988
        %s990 = sand.u32 %s362, 1
        %s991 = smul.addr %s990, 32
        %s992 = scalar_lea.vmem [#allocation19], %s991
        %p993 = pneg %p375
        %p994 = pneg %p372
        %s995 = sand.u32 %s30, 1
        %s996 = scalar_lea.sflag [#allocation5], %s995
        %s997 = sand.u32 %s388, 1
        %s998 = scalar_lea.vmem [#allocation20], %s997
        %p999 = pneg %p401
        %p1000 = pneg %p398
        %s1001 = sand.u32 %s30, 1
        %s1002 = scalar_lea.sflag [#allocation5], %s1001
        %s1003 = sand.u32 %s414, 1
        %s1004 = scalar_lea.vmem [#allocation21], %s1003
        %p1005 = pneg %p427
        %p1006 = pneg %p424
        %s1007 = sand.u32 %s30, 1
        %s1008 = scalar_lea.sflag [#allocation5], %s1007
        %s1009 = sand.u32 %s440, 1
        %s1010 = scalar_lea.vmem [#allocation22], %s1009
        %p1011 = pneg %p453
        %p1012 = pneg %p450
        %p1013 = pneg %p479
        %p1014 = pneg %p476
        %s1015 = smul.u32 2, %s34
        %s1016 = smul.u32 2, %s34
        %s1017 = smul.u32 2, %s34
        %p1019 = scmp.eq.s32.totalorder %s35, 0
        // Predicated region
        $region149: #{tpu_custom_call.1} parent=83 // pred_check
          %p1020 = pneg %p1019
        $region150: #{tpu_custom_call.1} parent=83 // pred_check_branch
          %1022 = sbr.rel (%p1020) target = $region152
        $region151: #{tpu_custom_call.1} parent=83 // pred_region
          %v1023 = vld [vmem:[#allocation4] sm:$0xff]
          %v1024 = vld [vmem:[#allocation4 + $0x8] sm:$0xff]
          %vm1025 = vcmask 261120
          %1026 = vst.msk [vmem:[#allocation2] sm:$0xff] %vm1025, %v1023
          %1027 = vst.msk [vmem:[#allocation2 + $0x8] sm:$0xff] %vm1025, %v1024
          %v1028 = vld [vmem:[#allocation7] sm:$0xff]
          %v1029 = vld [vmem:[#allocation7 + $0x8] sm:$0xff]
          %v1030 = vpack.c.bf16 %v1028, %v1028
          %v1031 = vpack.c.bf16 %v1029, %v1029
          %vm1032 = vcmask 257024
          %1033 = vst.msk [vmem:[#allocation3] sm:$0xf] %vm1032, %v1030
          %1034 = vst.msk [vmem:[#allocation3 + $0x4] sm:$0xf] %vm1032, %v1031
        $region152: #{tpu_custom_call.1} parent=83 // pred_fallthru
          _
        %v1035 = vld [vmem:[#allocation2] sm:$0xff]
        %v1036 = vld [vmem:[#allocation2 + $0x8] sm:$0xff]
        %v1037 = vld [vmem:[#allocation3] sm:$0xf]
        %v1038 = vld [vmem:[#allocation3 + $0x4] sm:$0xf]
        %v1039 = vld [vmem:[%s807] sm:$0xf]
        %v1040 = vld [vmem:[%s807 + $0x4] sm:$0xf]
        %v1041 = vld [vmem:[%s807 + $0x8] sm:$0xf]
        %v1042 = vld [vmem:[%s807 + $0xc] sm:$0xf]
        %v1043 = vld [vmem:[%s824] sm:$0xf]
        %v1044 = vld [vmem:[%s824 + $0x4] sm:$0xf]
        %v1045 = vld [vmem:[%s824 + $0x8] sm:$0xf]
        %v1046 = vld [vmem:[%s824 + $0xc] sm:$0xf]
        %v1047 = vld [vmem:[%s841] sm:$0xf]
        %v1048 = vld [vmem:[%s841 + $0x4] sm:$0xf]
        %v1049 = vld [vmem:[%s841 + $0x8] sm:$0xf]
        %v1050 = vld [vmem:[%s841 + $0xc] sm:$0xf]
        %v1051 = vpack.c.bf16 %v1036, %v1035
        %v1052 = vld [vmem:[%s815] sm:$0x1]
        %v1054 = vlaneseq
        %v1055 = vshrl.u32 %v1054, 7
        %v1056 = vsub.s32 0, %v1055
        %v1057 = vrot.slane %v1052, %v1056
        %v1063 = vunpack.c.l.b16 %v1039
        %v1064 = vunpack.c.l.b16 %v1040
        %v1065 = vunpack.c.l.b16 %v1041
        %v1066 = vunpack.c.l.b16 %v1042
        %v1067 = vpack.c.b16 %v1064, %v1063
        %v1068 = vpack.c.b16 %v1066, %v1065
        %vm1071 = vcmask 261120
        %v1073 = vsel %vm1071, %v1051, 0
        %1075 = vmatprep.subr.bf16.mxu0 0
        %1076 = vmatpush1.bf16.msra.mxu0 %v1067
        %1077 = vmatprep.subr.bf16.mxu0 0
        %1078 = vmatpush1.bf16.msra.mxu0 %v1068
        %1079 = vmatprep.subr.bf16.mxu0 0
        %1080 = vmatpush1.bf16.msra.mxu0 0
        %1081 = vmatprep.subr.bf16.mxu0 0
        %1082 = vmatpush1.bf16.msra.mxu0 0
        %1083 = vmatprep.subr.bf16.mxu0 0
        %1084 = vmatpush1.bf16.msra.mxu0 0
        %1085 = vmatprep.subr.bf16.mxu0 0
        %1086 = vmatpush1.bf16.msra.mxu0 0
        %1087 = vmatprep.subr.bf16.mxu0 0
        %1088 = vmatpush1.bf16.msra.mxu0 0
        %1089 = vmatprep.subr.bf16.mxu0 0
        %1090 = vmatpush1.bf16.msra.mxu0 0
        %1091 = vmatprep.subr.bf16.mxu0 0
        %1092 = vmatpush1.bf16.msra.mxu0 0
        %1093 = vmatprep.subr.bf16.mxu0 0
        %1094 = vmatpush1.bf16.msra.mxu0 0
        %1095 = vmatprep.subr.bf16.mxu0 0
        %1096 = vmatpush1.bf16.msra.mxu0 0
        %1097 = vmatprep.subr.bf16.mxu0 0
        %1098 = vmatpush1.bf16.msra.mxu0 0
        %1099 = vmatprep.subr.bf16.mxu0 0
        %1100 = vmatpush1.bf16.msra.mxu0 0
        %1101 = vmatprep.subr.bf16.mxu0 0
        %1102 = vmatpush1.bf16.msra.mxu0 0
        %1103 = vmatprep.subr.bf16.mxu0 0
        %1104 = vmatpush1.bf16.msra.mxu0 0
        %1105 = vmatprep.subr.bf16.mxu0 0
        %1106 = vmatpush1.bf16.msra.mxu0 0
        %1107 = vmatprep.mubr.bf16.mxu0 0
        %1108 = vmatmul.mubr.bf16.gmra.mrb[0].mxu0 %v1073
        %v1109 = vpop.f32.mrb[0].mxu0
        %v1110 = vadd.f32 %v1057, %v1109
        %v1111 = vpop.f32.mrb[0].mxu0
        %v1112 = vpop.f32.mrb[0].mxu0
        %v1113 = vadd.f32 %v1057, %v1112
        %v1114 = vpop.f32.mrb[0].mxu0
        %1115 = vdwg.mxu0
        %v1116 = vld [vmem:[%s832] sm:$0x1]
        %v1118 = vlaneseq
        %v1119 = vshrl.u32 %v1118, 7
        %v1120 = vsub.s32 0, %v1119
        %v1121 = vrot.slane %v1116, %v1120
        %v1125 = vunpack.c.l.b16 %v1037
        %v1126 = vunpack.c.l.b16 %v1038
        %v1127 = vpack.c.b16 %v1126, %v1125
        %v1132 = vunpack.c.l.b16 %v1043
        %v1133 = vunpack.c.l.b16 %v1044
        %v1134 = vunpack.c.l.b16 %v1045
        %v1135 = vunpack.c.l.b16 %v1046
        %v1136 = vpack.c.b16 %v1133, %v1132
        %v1137 = vpack.c.b16 %v1135, %v1134
        %v1141 = vsel %vm1071, %v1127, 0
        %1143 = vmatprep.subr.bf16.mxu0 0
        %1144 = vmatpush1.bf16.msra.mxu0 %v1136
        %1145 = vmatprep.subr.bf16.mxu0 0
        %1146 = vmatpush1.bf16.msra.mxu0 %v1137
        %1147 = vmatprep.subr.bf16.mxu0 0
        %1148 = vmatpush1.bf16.msra.mxu0 0
        %1149 = vmatprep.subr.bf16.mxu0 0
        %1150 = vmatpush1.bf16.msra.mxu0 0
        %1151 = vmatprep.subr.bf16.mxu0 0
        %1152 = vmatpush1.bf16.msra.mxu0 0
        %1153 = vmatprep.subr.bf16.mxu0 0
        %1154 = vmatpush1.bf16.msra.mxu0 0
        %1155 = vmatprep.subr.bf16.mxu0 0
        %1156 = vmatpush1.bf16.msra.mxu0 0
        %1157 = vmatprep.subr.bf16.mxu0 0
        %1158 = vmatpush1.bf16.msra.mxu0 0
        %1159 = vmatprep.subr.bf16.mxu0 0
        %1160 = vmatpush1.bf16.msra.mxu0 0
        %1161 = vmatprep.subr.bf16.mxu0 0
        %1162 = vmatpush1.bf16.msra.mxu0 0
        %1163 = vmatprep.subr.bf16.mxu0 0
        %1164 = vmatpush1.bf16.msra.mxu0 0
        %1165 = vmatprep.subr.bf16.mxu0 0
        %1166 = vmatpush1.bf16.msra.mxu0 0
        %1167 = vmatprep.subr.bf16.mxu0 0
        %1168 = vmatpush1.bf16.msra.mxu0 0
        %1169 = vmatprep.subr.bf16.mxu0 0
        %1170 = vmatpush1.bf16.msra.mxu0 0
        %1171 = vmatprep.subr.bf16.mxu0 0
        %1172 = vmatpush1.bf16.msra.mxu0 0
        %1173 = vmatprep.subr.bf16.mxu0 0
        %1174 = vmatpush1.bf16.msra.mxu0 0
        %1175 = vmatprep.mubr.bf16.mxu0 0
        %1176 = vmatmul.mubr.bf16.gmra.mrb[0].mxu0 %v1141
        %v1177 = vpop.f32.mrb[0].mxu0
        %v1178 = vadd.f32 %v1121, %v1177
        %v1179 = vpop.f32.mrb[0].mxu0
        %v1180 = vpop.f32.mrb[0].mxu0
        %v1181 = vadd.f32 %v1121, %v1180
        %v1182 = vpop.f32.mrb[0].mxu0
        %1183 = vdwg.mxu0
        %v1184 = vpack.c.bf16 %v1113, %v1110
        %v1185 = vpack.c.bf16 %v1181, %v1178
        %v1186 = vlaneseq
        %v1187 = vshrl.u32 %v1186, 7
        %v1188 = vlaneseq
        %v1189 = vand.u32 %v1188, 127
        %vm1190 = vcmp.lt.s32.totalorder %v1189, %v1187
        %vm1191 = vcmp.eq.s32.totalorder %v1187, 0
        %vm1192 = vcmask 130048
        %v1194 = vsel %vm1192, %v1184, 0
        %1196 = vmatprep.subr.bf16.mxu0 0
        %1197 = vmatpush1.bf16.xpose.msra.mxu0 %v1194
        %1198 = vmatprep.subr.bf16.mxu0 0
        %1199 = vmatpush1.bf16.xpose.msra.mxu0 0
        %1200 = vmatprep.subr.bf16.mxu0 0
        %1201 = vmatpush1.bf16.xpose.msra.mxu0 0
        %1202 = vmatprep.subr.bf16.mxu0 0
        %1203 = vmatpush1.bf16.xpose.msra.mxu0 0
        %1204 = vmatprep.subr.bf16.mxu0 0
        %1205 = vmatpush1.bf16.xpose.msra.mxu0 0
        %1206 = vmatprep.subr.bf16.mxu0 0
        %1207 = vmatpush1.bf16.xpose.msra.mxu0 0
        %1208 = vmatprep.subr.bf16.mxu0 0
        %1209 = vmatpush1.bf16.xpose.msra.mxu0 0
        %1210 = vmatprep.subr.bf16.mxu0 0
        %1211 = vmatpush1.bf16.xpose.msra.mxu0 0
        %1212 = vmatprep.subr.bf16.mxu0 0
        %1213 = vmatpush1.bf16.xpose.msra.mxu0 0
        %1214 = vmatprep.subr.bf16.mxu0 0
        %1215 = vmatpush1.bf16.xpose.msra.mxu0 0
        %1216 = vmatprep.subr.bf16.mxu0 0
        %1217 = vmatpush1.bf16.xpose.msra.mxu0 0
        %1218 = vmatprep.subr.bf16.mxu0 0
        %1219 = vmatpush1.bf16.xpose.msra.mxu0 0
        %1220 = vmatprep.subr.bf16.mxu0 0
        %1221 = vmatpush1.bf16.xpose.msra.mxu0 0
        %1222 = vmatprep.subr.bf16.mxu0 0
        %1223 = vmatpush1.bf16.xpose.msra.mxu0 0
        %1224 = vmatprep.subr.bf16.mxu0 0
        %1225 = vmatpush1.bf16.xpose.msra.mxu0 0
        %1226 = vmatprep.subr.bf16.mxu0 0
        %1227 = vmatpush1.bf16.xpose.msra.mxu0 0
        %1228 = vmatprep.mubr.bf16.mxu0 0
        %1229 = vmatmul.mubr.bf16.gmra.mrb[0].mxu0 %v1194
        %v1230 = vpop.f32.mrb[0].mxu0
        %v1231 = vadd.f32 0.0, %v1230
        %v1232 = vpop.f32.mrb[0].mxu0
        %v1233 = vpop.f32.mrb[0].mxu0
        %v1234 = vpop.f32.mrb[0].mxu0
        %1235 = vdwg.mxu0
        %v1236 = vmul.f32 %v1231, 0.25
        %v1237 = vsel %vm1190, %v1236, -1e+32
        %vm1238 = vcmask 64512
        %v1239 = vsel %vm1238, %v1237, -inf
        %1240 = vmax.xlane.f32.xlu0 %v1239
        %v1241 = vpop.xlane.xlu0 %1240
        %v1242 = vsub.f32 %v1237, %v1241
        %v1243 = vmul.f32 %v1242, 1.442695
        %v1244 = vpow.pop %v1243
        %v1245 = vsel %vm1238, %v1244, 0.0
        %1246 = vadd.xlane.f32.xlu0 %v1245
        %v1247 = vpop.xlane.xlu0 %1246
        %v1248 = vrcp.pop %v1247
        %v1249 = vmul.f32 %v1244, %v1248
        %v1250 = vpack.c.bf16 %v1249, %v1249
        %v1252 = vsel %vm1238, %v1250, 0
        %vm1254 = vcmask 1043456
        %v1256 = vsel %vm1254, %v1185, 0
        %1258 = vmatprep.subr.bf16.mxu0 0
        %1259 = vmatpush1.bf16.msra.mxu0 %v1256
        %1260 = vmatprep.subr.bf16.mxu0 0
        %1261 = vmatpush1.bf16.msra.mxu0 0
        %1262 = vmatprep.subr.bf16.mxu0 0
        %1263 = vmatpush1.bf16.msra.mxu0 0
        %1264 = vmatprep.subr.bf16.mxu0 0
        %1265 = vmatpush1.bf16.msra.mxu0 0
        %1266 = vmatprep.subr.bf16.mxu0 0
        %1267 = vmatpush1.bf16.msra.mxu0 0
        %1268 = vmatprep.subr.bf16.mxu0 0
        %1269 = vmatpush1.bf16.msra.mxu0 0
        %1270 = vmatprep.subr.bf16.mxu0 0
        %1271 = vmatpush1.bf16.msra.mxu0 0
        %1272 = vmatprep.subr.bf16.mxu0 0
        %1273 = vmatpush1.bf16.msra.mxu0 0
        %1274 = vmatprep.subr.bf16.mxu0 0
        %1275 = vmatpush1.bf16.msra.mxu0 0
        %1276 = vmatprep.subr.bf16.mxu0 0
        %1277 = vmatpush1.bf16.msra.mxu0 0
        %1278 = vmatprep.subr.bf16.mxu0 0
        %1279 = vmatpush1.bf16.msra.mxu0 0
        %1280 = vmatprep.subr.bf16.mxu0 0
        %1281 = vmatpush1.bf16.msra.mxu0 0
        %1282 = vmatprep.subr.bf16.mxu0 0
        %1283 = vmatpush1.bf16.msra.mxu0 0
        %1284 = vmatprep.subr.bf16.mxu0 0
        %1285 = vmatpush1.bf16.msra.mxu0 0
        %1286 = vmatprep.subr.bf16.mxu0 0
        %1287 = vmatpush1.bf16.msra.mxu0 0
        %1288 = vmatprep.subr.bf16.mxu0 0
        %1289 = vmatpush1.bf16.msra.mxu0 0
        %1290 = vmatprep.mubr.bf16.mxu0 0
        %1291 = vmatmul.mubr.bf16.gmra.mrb[0].mxu0 %v1252
        %v1292 = vpop.f32.mrb[0].mxu0
        %v1293 = vadd.f32 0.0, %v1292
        %v1294 = vpop.f32.mrb[0].mxu0
        %v1295 = vpop.f32.mrb[0].mxu0
        %v1296 = vpop.f32.mrb[0].mxu0
        %1297 = vdwg.mxu0
        %v1298 = vpack.c.bf16 %v1293, %v1293
        %1300 = vrot.lane.b32.xlu0 %v1184, 112
        %v1301 = vpop.permute.xlu0 %1300
        %v1303 = vsel %vm1192, %v1301, 0
        %1305 = vmatprep.subr.bf16.mxu0 0
        %1306 = vmatpush1.bf16.xpose.msra.mxu0 %v1303
        %1307 = vmatprep.subr.bf16.mxu0 0
        %1308 = vmatpush1.bf16.xpose.msra.mxu0 0
        %1309 = vmatprep.subr.bf16.mxu0 0
        %1310 = vmatpush1.bf16.xpose.msra.mxu0 0
        %1311 = vmatprep.subr.bf16.mxu0 0
        %1312 = vmatpush1.bf16.xpose.msra.mxu0 0
        %1313 = vmatprep.subr.bf16.mxu0 0
        %1314 = vmatpush1.bf16.xpose.msra.mxu0 0
        %1315 = vmatprep.subr.bf16.mxu0 0
        %1316 = vmatpush1.bf16.xpose.msra.mxu0 0
        %1317 = vmatprep.subr.bf16.mxu0 0
        %1318 = vmatpush1.bf16.xpose.msra.mxu0 0
        %1319 = vmatprep.subr.bf16.mxu0 0
        %1320 = vmatpush1.bf16.xpose.msra.mxu0 0
        %1321 = vmatprep.subr.bf16.mxu0 0
        %1322 = vmatpush1.bf16.xpose.msra.mxu0 0
        %1323 = vmatprep.subr.bf16.mxu0 0
        %1324 = vmatpush1.bf16.xpose.msra.mxu0 0
        %1325 = vmatprep.subr.bf16.mxu0 0
        %1326 = vmatpush1.bf16.xpose.msra.mxu0 0
        %1327 = vmatprep.subr.bf16.mxu0 0
        %1328 = vmatpush1.bf16.xpose.msra.mxu0 0
        %1329 = vmatprep.subr.bf16.mxu0 0
        %1330 = vmatpush1.bf16.xpose.msra.mxu0 0
        %1331 = vmatprep.subr.bf16.mxu0 0
        %1332 = vmatpush1.bf16.xpose.msra.mxu0 0
        %1333 = vmatprep.subr.bf16.mxu0 0
        %1334 = vmatpush1.bf16.xpose.msra.mxu0 0
        %1335 = vmatprep.subr.bf16.mxu0 0
        %1336 = vmatpush1.bf16.xpose.msra.mxu0 0
        %1337 = vmatprep.mubr.bf16.mxu0 0
        %1338 = vmatmul.mubr.bf16.gmra.mrb[0].mxu0 %v1303
        %v1339 = vpop.f32.mrb[0].mxu0
        %v1340 = vadd.f32 0.0, %v1339
        %v1341 = vpop.f32.mrb[0].mxu0
        %v1342 = vpop.f32.mrb[0].mxu0
        %v1343 = vpop.f32.mrb[0].mxu0
        %1344 = vdwg.mxu0
        %v1345 = vmul.f32 %v1340, 0.25
        %v1346 = vsel %vm1190, %v1345, -1e+32
        %v1347 = vsel %vm1238, %v1346, -inf
        %1348 = vmax.xlane.f32.xlu0 %v1347
        %v1349 = vpop.xlane.xlu0 %1348
        %v1350 = vsub.f32 %v1346, %v1349
        %v1351 = vmul.f32 %v1350, 1.442695
        %v1352 = vpow.pop %v1351
        %v1353 = vsel %vm1238, %v1352, 0.0
        %1354 = vadd.xlane.f32.xlu0 %v1353
        %v1355 = vpop.xlane.xlu0 %1354
        %v1356 = vrcp.pop %v1355
        %v1357 = vmul.f32 %v1352, %v1356
        %v1358 = vpack.c.bf16 %v1357, %v1357
        %1360 = vrot.lane.b32.xlu0 %v1185, 112
        %v1361 = vpop.permute.xlu0 %1360
        %v1363 = vsel %vm1238, %v1358, 0
        %v1366 = vsel %vm1254, %v1361, 0
        %1368 = vmatprep.subr.bf16.mxu0 0
        %1369 = vmatpush1.bf16.msra.mxu0 %v1366
        %1370 = vmatprep.subr.bf16.mxu0 0
        %1371 = vmatpush1.bf16.msra.mxu0 0
        %1372 = vmatprep.subr.bf16.mxu0 0
        %1373 = vmatpush1.bf16.msra.mxu0 0
        %1374 = vmatprep.subr.bf16.mxu0 0
        %1375 = vmatpush1.bf16.msra.mxu0 0
        %1376 = vmatprep.subr.bf16.mxu0 0
        %1377 = vmatpush1.bf16.msra.mxu0 0
        %1378 = vmatprep.subr.bf16.mxu0 0
        %1379 = vmatpush1.bf16.msra.mxu0 0
        %1380 = vmatprep.subr.bf16.mxu0 0
        %1381 = vmatpush1.bf16.msra.mxu0 0
        %1382 = vmatprep.subr.bf16.mxu0 0
        %1383 = vmatpush1.bf16.msra.mxu0 0
        %1384 = vmatprep.subr.bf16.mxu0 0
        %1385 = vmatpush1.bf16.msra.mxu0 0
        %1386 = vmatprep.subr.bf16.mxu0 0
        %1387 = vmatpush1.bf16.msra.mxu0 0
        %1388 = vmatprep.subr.bf16.mxu0 0
        %1389 = vmatpush1.bf16.msra.mxu0 0
        %1390 = vmatprep.subr.bf16.mxu0 0
        %1391 = vmatpush1.bf16.msra.mxu0 0
        %1392 = vmatprep.subr.bf16.mxu0 0
        %1393 = vmatpush1.bf16.msra.mxu0 0
        %1394 = vmatprep.subr.bf16.mxu0 0
        %1395 = vmatpush1.bf16.msra.mxu0 0
        %1396 = vmatprep.subr.bf16.mxu0 0
        %1397 = vmatpush1.bf16.msra.mxu0 0
        %1398 = vmatprep.subr.bf16.mxu0 0
        %1399 = vmatpush1.bf16.msra.mxu0 0
        %1400 = vmatprep.mubr.bf16.mxu0 0
        %1401 = vmatmul.mubr.bf16.gmra.mrb[0].mxu0 %v1363
        %v1402 = vpop.f32.mrb[0].mxu0
        %v1403 = vadd.f32 0.0, %v1402
        %v1404 = vpop.f32.mrb[0].mxu0
        %v1405 = vpop.f32.mrb[0].mxu0
        %v1406 = vpop.f32.mrb[0].mxu0
        %1407 = vdwg.mxu0
        %v1408 = vpack.c.bf16 %v1403, %v1403
        %v1411 = vunpack.c.l.b16 %v1049
        %v1412 = vunpack.c.l.b16 %v1050
        %v1413 = vpack.c.b16 %v1412, %v1411
        %v1416 = vsel %vm1192, %v1408, 0
        %1418 = vmatprep.subr.bf16.mxu0 0
        %1419 = vmatpush1.bf16.msra.mxu0 %v1413
        %1420 = vmatprep.subr.bf16.mxu0 0
        %1421 = vmatpush1.bf16.msra.mxu0 0
        %1422 = vmatprep.subr.bf16.mxu0 0
        %1423 = vmatpush1.bf16.msra.mxu0 0
        %1424 = vmatprep.subr.bf16.mxu0 0
        %1425 = vmatpush1.bf16.msra.mxu0 0
        %1426 = vmatprep.subr.bf16.mxu0 0
        %1427 = vmatpush1.bf16.msra.mxu0 0
        %1428 = vmatprep.subr.bf16.mxu0 0
        %1429 = vmatpush1.bf16.msra.mxu0 0
        %1430 = vmatprep.subr.bf16.mxu0 0
        %1431 = vmatpush1.bf16.msra.mxu0 0
        %1432 = vmatprep.subr.bf16.mxu0 0
        %1433 = vmatpush1.bf16.msra.mxu0 0
        %1434 = vmatprep.subr.bf16.mxu0 0
        %1435 = vmatpush1.bf16.msra.mxu0 0
        %1436 = vmatprep.subr.bf16.mxu0 0
        %1437 = vmatpush1.bf16.msra.mxu0 0
        %1438 = vmatprep.subr.bf16.mxu0 0
        %1439 = vmatpush1.bf16.msra.mxu0 0
        %1440 = vmatprep.subr.bf16.mxu0 0
        %1441 = vmatpush1.bf16.msra.mxu0 0
        %1442 = vmatprep.subr.bf16.mxu0 0
        %1443 = vmatpush1.bf16.msra.mxu0 0
        %1444 = vmatprep.subr.bf16.mxu0 0
        %1445 = vmatpush1.bf16.msra.mxu0 0
        %1446 = vmatprep.subr.bf16.mxu0 0
        %1447 = vmatpush1.bf16.msra.mxu0 0
        %1448 = vmatprep.subr.bf16.mxu0 0
        %1449 = vmatpush1.bf16.msra.mxu0 0
        %1450 = vmatprep.mubr.bf16.mxu0 0
        %1451 = vmatmul.mubr.bf16.gmra.mrb[0].mxu0 %v1416
        %v1452 = vpop.f32.mrb[0].mxu0
        %v1453 = vadd.f32 0.0, %v1452
        %v1454 = vpop.f32.mrb[0].mxu0
        %v1455 = vpop.f32.mrb[0].mxu0
        %v1456 = vpop.f32.mrb[0].mxu0
        %1457 = vdwg.mxu0
        %v1460 = vunpack.c.l.b16 %v1047
        %v1461 = vunpack.c.l.b16 %v1048
        %v1462 = vpack.c.b16 %v1461, %v1460
        %v1465 = vsel %vm1192, %v1298, 0
        %1467 = vmatprep.subr.bf16.mxu0 0
        %1468 = vmatpush1.bf16.msra.mxu0 %v1462
        %1469 = vmatprep.subr.bf16.mxu0 0
        %1470 = vmatpush1.bf16.msra.mxu0 0
        %1471 = vmatprep.subr.bf16.mxu0 0
        %1472 = vmatpush1.bf16.msra.mxu0 0
        %1473 = vmatprep.subr.bf16.mxu0 0
        %1474 = vmatpush1.bf16.msra.mxu0 0
        %1475 = vmatprep.subr.bf16.mxu0 0
        %1476 = vmatpush1.bf16.msra.mxu0 0
        %1477 = vmatprep.subr.bf16.mxu0 0
        %1478 = vmatpush1.bf16.msra.mxu0 0
        %1479 = vmatprep.subr.bf16.mxu0 0
        %1480 = vmatpush1.bf16.msra.mxu0 0
        %1481 = vmatprep.subr.bf16.mxu0 0
        %1482 = vmatpush1.bf16.msra.mxu0 0
        %1483 = vmatprep.subr.bf16.mxu0 0
        %1484 = vmatpush1.bf16.msra.mxu0 0
        %1485 = vmatprep.subr.bf16.mxu0 0
        %1486 = vmatpush1.bf16.msra.mxu0 0
        %1487 = vmatprep.subr.bf16.mxu0 0
        %1488 = vmatpush1.bf16.msra.mxu0 0
        %1489 = vmatprep.subr.bf16.mxu0 0
        %1490 = vmatpush1.bf16.msra.mxu0 0
        %1491 = vmatprep.subr.bf16.mxu0 0
        %1492 = vmatpush1.bf16.msra.mxu0 0
        %1493 = vmatprep.subr.bf16.mxu0 0
        %1494 = vmatpush1.bf16.msra.mxu0 0
        %1495 = vmatprep.subr.bf16.mxu0 0
        %1496 = vmatpush1.bf16.msra.mxu0 0
        %1497 = vmatprep.subr.bf16.mxu0 0
        %1498 = vmatpush1.bf16.msra.mxu0 0
        %1499 = vmatprep.mubr.bf16.mxu0 0
        %1500 = vmatmul.mubr.bf16.gmra.mrb[0].mxu0 %v1465
        %v1501 = vpop.f32.mrb[0].mxu0
        %v1502 = vadd.f32 %v1453, %v1501
        %v1503 = vpop.f32.mrb[0].mxu0
        %v1504 = vpop.f32.mrb[0].mxu0
        %v1505 = vpop.f32.mrb[0].mxu0
        %1506 = vdwg.mxu0
        %v1507 = vsel %vm1191, 1, 0
        %vm1508 = vcmp.eq.s32.totalorder %v1507, 1
        %v1509 = vsel %vm1508, 0.0, %v1502
        %v1510 = vrot.slane %v1184, 4
        %v1512 = vsel %vm1192, %v1510, 0
        %1514 = vmatprep.subr.bf16.mxu0 0
        %1515 = vmatpush1.bf16.xpose.msra.mxu0 %v1512
        %1516 = vmatprep.subr.bf16.mxu0 0
        %1517 = vmatpush1.bf16.xpose.msra.mxu0 0
        %1518 = vmatprep.subr.bf16.mxu0 0
        %1519 = vmatpush1.bf16.xpose.msra.mxu0 0
        %1520 = vmatprep.subr.bf16.mxu0 0
        %1521 = vmatpush1.bf16.xpose.msra.mxu0 0
        %1522 = vmatprep.subr.bf16.mxu0 0
        %1523 = vmatpush1.bf16.xpose.msra.mxu0 0
        %1524 = vmatprep.subr.bf16.mxu0 0
        %1525 = vmatpush1.bf16.xpose.msra.mxu0 0
        %1526 = vmatprep.subr.bf16.mxu0 0
        %1527 = vmatpush1.bf16.xpose.msra.mxu0 0
        %1528 = vmatprep.subr.bf16.mxu0 0
        %1529 = vmatpush1.bf16.xpose.msra.mxu0 0
        %1530 = vmatprep.subr.bf16.mxu0 0
        %1531 = vmatpush1.bf16.xpose.msra.mxu0 0
        %1532 = vmatprep.subr.bf16.mxu0 0
        %1533 = vmatpush1.bf16.xpose.msra.mxu0 0
        %1534 = vmatprep.subr.bf16.mxu0 0
        %1535 = vmatpush1.bf16.xpose.msra.mxu0 0
        %1536 = vmatprep.subr.bf16.mxu0 0
        %1537 = vmatpush1.bf16.xpose.msra.mxu0 0
        %1538 = vmatprep.subr.bf16.mxu0 0
        %1539 = vmatpush1.bf16.xpose.msra.mxu0 0
        %1540 = vmatprep.subr.bf16.mxu0 0
        %1541 = vmatpush1.bf16.xpose.msra.mxu0 0
        %1542 = vmatprep.subr.bf16.mxu0 0
        %1543 = vmatpush1.bf16.xpose.msra.mxu0 0
        %1544 = vmatprep.subr.bf16.mxu0 0
        %1545 = vmatpush1.bf16.xpose.msra.mxu0 0
        %1546 = vmatprep.mubr.bf16.mxu0 0
        %1547 = vmatmul.mubr.bf16.gmra.mrb[0].mxu0 %v1512
        %v1548 = vpop.f32.mrb[0].mxu0
        %v1549 = vadd.f32 0.0, %v1548
        %v1550 = vpop.f32.mrb[0].mxu0
        %v1551 = vpop.f32.mrb[0].mxu0
        %v1552 = vpop.f32.mrb[0].mxu0
        %1553 = vdwg.mxu0
        %v1554 = vmul.f32 %v1549, 0.25
        %v1555 = vsel %vm1190, %v1554, -1e+32
        %v1556 = vsel %vm1238, %v1555, -inf
        %1557 = vmax.xlane.f32.xlu0 %v1556
        %v1558 = vpop.xlane.xlu0 %1557
        %v1559 = vsub.f32 %v1555, %v1558
        %v1560 = vmul.f32 %v1559, 1.442695
        %v1561 = vpow.pop %v1560
        %v1562 = vsel %vm1238, %v1561, 0.0
        %1563 = vadd.xlane.f32.xlu0 %v1562
        %v1564 = vpop.xlane.xlu0 %1563
        %v1565 = vrcp.pop %v1564
        %v1566 = vmul.f32 %v1561, %v1565
        %v1567 = vpack.c.bf16 %v1566, %v1566
        %v1568 = vrot.slane %v1185, 4
        %v1570 = vsel %vm1238, %v1567, 0
        %v1573 = vsel %vm1254, %v1568, 0
        %1575 = vmatprep.subr.bf16.mxu0 0
        %1576 = vmatpush1.bf16.msra.mxu0 %v1573
        %1577 = vmatprep.subr.bf16.mxu0 0
        %1578 = vmatpush1.bf16.msra.mxu0 0
        %1579 = vmatprep.subr.bf16.mxu0 0
        %1580 = vmatpush1.bf16.msra.mxu0 0
        %1581 = vmatprep.subr.bf16.mxu0 0
        %1582 = vmatpush1.bf16.msra.mxu0 0
        %1583 = vmatprep.subr.bf16.mxu0 0
        %1584 = vmatpush1.bf16.msra.mxu0 0
        %1585 = vmatprep.subr.bf16.mxu0 0
        %1586 = vmatpush1.bf16.msra.mxu0 0
        %1587 = vmatprep.subr.bf16.mxu0 0
        %1588 = vmatpush1.bf16.msra.mxu0 0
        %1589 = vmatprep.subr.bf16.mxu0 0
        %1590 = vmatpush1.bf16.msra.mxu0 0
        %1591 = vmatprep.subr.bf16.mxu0 0
        %1592 = vmatpush1.bf16.msra.mxu0 0
        %1593 = vmatprep.subr.bf16.mxu0 0
        %1594 = vmatpush1.bf16.msra.mxu0 0
        %1595 = vmatprep.subr.bf16.mxu0 0
        %1596 = vmatpush1.bf16.msra.mxu0 0
        %1597 = vmatprep.subr.bf16.mxu0 0
        %1598 = vmatpush1.bf16.msra.mxu0 0
        %1599 = vmatprep.subr.bf16.mxu0 0
        %1600 = vmatpush1.bf16.msra.mxu0 0
        %1601 = vmatprep.subr.bf16.mxu0 0
        %1602 = vmatpush1.bf16.msra.mxu0 0
        %1603 = vmatprep.subr.bf16.mxu0 0
        %1604 = vmatpush1.bf16.msra.mxu0 0
        %1605 = vmatprep.subr.bf16.mxu0 0
        %1606 = vmatpush1.bf16.msra.mxu0 0
        %1607 = vmatprep.mubr.bf16.mxu0 0
        %1608 = vmatmul.mubr.bf16.gmra.mrb[0].mxu0 %v1570
        %v1609 = vpop.f32.mrb[0].mxu0
        %v1610 = vadd.f32 0.0, %v1609
        %v1611 = vpop.f32.mrb[0].mxu0
        %v1612 = vpop.f32.mrb[0].mxu0
        %v1613 = vpop.f32.mrb[0].mxu0
        %1614 = vdwg.mxu0
        %v1615 = vpack.c.bf16 %v1610, %v1610
        %1616 = vrot.lane.b32.xlu0 %v1510, 112
        %v1617 = vpop.permute.xlu0 %1616
        %v1619 = vsel %vm1192, %v1617, 0
        %1621 = vmatprep.subr.bf16.mxu0 0
        %1622 = vmatpush1.bf16.xpose.msra.mxu0 %v1619
        %1623 = vmatprep.subr.bf16.mxu0 0
        %1624 = vmatpush1.bf16.xpose.msra.mxu0 0
        %1625 = vmatprep.subr.bf16.mxu0 0
        %1626 = vmatpush1.bf16.xpose.msra.mxu0 0
        %1627 = vmatprep.subr.bf16.mxu0 0
        %1628 = vmatpush1.bf16.xpose.msra.mxu0 0
        %1629 = vmatprep.subr.bf16.mxu0 0
        %1630 = vmatpush1.bf16.xpose.msra.mxu0 0
        %1631 = vmatprep.subr.bf16.mxu0 0
        %1632 = vmatpush1.bf16.xpose.msra.mxu0 0
        %1633 = vmatprep.subr.bf16.mxu0 0
        %1634 = vmatpush1.bf16.xpose.msra.mxu0 0
        %1635 = vmatprep.subr.bf16.mxu0 0
        %1636 = vmatpush1.bf16.xpose.msra.mxu0 0
        %1637 = vmatprep.subr.bf16.mxu0 0
        %1638 = vmatpush1.bf16.xpose.msra.mxu0 0
        %1639 = vmatprep.subr.bf16.mxu0 0
        %1640 = vmatpush1.bf16.xpose.msra.mxu0 0
        %1641 = vmatprep.subr.bf16.mxu0 0
        %1642 = vmatpush1.bf16.xpose.msra.mxu0 0
        %1643 = vmatprep.subr.bf16.mxu0 0
        %1644 = vmatpush1.bf16.xpose.msra.mxu0 0
        %1645 = vmatprep.subr.bf16.mxu0 0
        %1646 = vmatpush1.bf16.xpose.msra.mxu0 0
        %1647 = vmatprep.subr.bf16.mxu0 0
        %1648 = vmatpush1.bf16.xpose.msra.mxu0 0
        %1649 = vmatprep.subr.bf16.mxu0 0
        %1650 = vmatpush1.bf16.xpose.msra.mxu0 0
        %1651 = vmatprep.subr.bf16.mxu0 0
        %1652 = vmatpush1.bf16.xpose.msra.mxu0 0
        %1653 = vmatprep.mubr.bf16.mxu0 0
        %1654 = vmatmul.mubr.bf16.gmra.mrb[0].mxu0 %v1619
        %v1655 = vpop.f32.mrb[0].mxu0
        %v1656 = vadd.f32 0.0, %v1655
        %v1657 = vpop.f32.mrb[0].mxu0
        %v1658 = vpop.f32.mrb[0].mxu0
        %v1659 = vpop.f32.mrb[0].mxu0
        %1660 = vdwg.mxu0
        %v1661 = vmul.f32 %v1656, 0.25
        %v1662 = vsel %vm1190, %v1661, -1e+32
        %v1663 = vsel %vm1238, %v1662, -inf
        %1664 = vmax.xlane.f32.xlu0 %v1663
        %v1665 = vpop.xlane.xlu0 %1664
        %v1666 = vsub.f32 %v1662, %v1665
        %v1667 = vmul.f32 %v1666, 1.442695
        %v1668 = vpow.pop %v1667
        %v1669 = vsel %vm1238, %v1668, 0.0
        %1670 = vadd.xlane.f32.xlu0 %v1669
        %v1671 = vpop.xlane.xlu0 %1670
        %v1672 = vrcp.pop %v1671
        %v1673 = vmul.f32 %v1668, %v1672
        %v1674 = vpack.c.bf16 %v1673, %v1673
        %1675 = vrot.lane.b32.xlu0 %v1568, 112
        %v1676 = vpop.permute.xlu0 %1675
        %v1678 = vsel %vm1238, %v1674, 0
        %v1681 = vsel %vm1254, %v1676, 0
        %1683 = vmatprep.subr.bf16.mxu0 0
        %1684 = vmatpush1.bf16.msra.mxu0 %v1681
        %1685 = vmatprep.subr.bf16.mxu0 0
        %1686 = vmatpush1.bf16.msra.mxu0 0
        %1687 = vmatprep.subr.bf16.mxu0 0
        %1688 = vmatpush1.bf16.msra.mxu0 0
        %1689 = vmatprep.subr.bf16.mxu0 0
        %1690 = vmatpush1.bf16.msra.mxu0 0
        %1691 = vmatprep.subr.bf16.mxu0 0
        %1692 = vmatpush1.bf16.msra.mxu0 0
        %1693 = vmatprep.subr.bf16.mxu0 0
        %1694 = vmatpush1.bf16.msra.mxu0 0
        %1695 = vmatprep.subr.bf16.mxu0 0
        %1696 = vmatpush1.bf16.msra.mxu0 0
        %1697 = vmatprep.subr.bf16.mxu0 0
        %1698 = vmatpush1.bf16.msra.mxu0 0
        %1699 = vmatprep.subr.bf16.mxu0 0
        %1700 = vmatpush1.bf16.msra.mxu0 0
        %1701 = vmatprep.subr.bf16.mxu0 0
        %1702 = vmatpush1.bf16.msra.mxu0 0
        %1703 = vmatprep.subr.bf16.mxu0 0
        %1704 = vmatpush1.bf16.msra.mxu0 0
        %1705 = vmatprep.subr.bf16.mxu0 0
        %1706 = vmatpush1.bf16.msra.mxu0 0
        %1707 = vmatprep.subr.bf16.mxu0 0
        %1708 = vmatpush1.bf16.msra.mxu0 0
        %1709 = vmatprep.subr.bf16.mxu0 0
        %1710 = vmatpush1.bf16.msra.mxu0 0
        %1711 = vmatprep.subr.bf16.mxu0 0
        %1712 = vmatpush1.bf16.msra.mxu0 0
        %1713 = vmatprep.subr.bf16.mxu0 0
        %1714 = vmatpush1.bf16.msra.mxu0 0
        %1715 = vmatprep.mubr.bf16.mxu0 0
        %1716 = vmatmul.mubr.bf16.gmra.mrb[0].mxu0 %v1678
        %v1717 = vpop.f32.mrb[0].mxu0
        %v1718 = vadd.f32 0.0, %v1717
        %v1719 = vpop.f32.mrb[0].mxu0
        %v1720 = vpop.f32.mrb[0].mxu0
        %v1721 = vpop.f32.mrb[0].mxu0
        %1722 = vdwg.mxu0
        %v1723 = vpack.c.bf16 %v1718, %v1718
        %v1725 = vsel %vm1192, %v1723, 0
        %1727 = vmatprep.subr.bf16.mxu0 0
        %1728 = vmatpush1.bf16.msra.mxu0 %v1413
        %1729 = vmatprep.subr.bf16.mxu0 0
        %1730 = vmatpush1.bf16.msra.mxu0 0
        %1731 = vmatprep.subr.bf16.mxu0 0
        %1732 = vmatpush1.bf16.msra.mxu0 0
        %1733 = vmatprep.subr.bf16.mxu0 0
        %1734 = vmatpush1.bf16.msra.mxu0 0
        %1735 = vmatprep.subr.bf16.mxu0 0
        %1736 = vmatpush1.bf16.msra.mxu0 0
        %1737 = vmatprep.subr.bf16.mxu0 0
        %1738 = vmatpush1.bf16.msra.mxu0 0
        %1739 = vmatprep.subr.bf16.mxu0 0
        %1740 = vmatpush1.bf16.msra.mxu0 0
        %1741 = vmatprep.subr.bf16.mxu0 0
        %1742 = vmatpush1.bf16.msra.mxu0 0
        %1743 = vmatprep.subr.bf16.mxu0 0
        %1744 = vmatpush1.bf16.msra.mxu0 0
        %1745 = vmatprep.subr.bf16.mxu0 0
        %1746 = vmatpush1.bf16.msra.mxu0 0
        %1747 = vmatprep.subr.bf16.mxu0 0
        %1748 = vmatpush1.bf16.msra.mxu0 0
        %1749 = vmatprep.subr.bf16.mxu0 0
        %1750 = vmatpush1.bf16.msra.mxu0 0
        %1751 = vmatprep.subr.bf16.mxu0 0
        %1752 = vmatpush1.bf16.msra.mxu0 0
        %1753 = vmatprep.subr.bf16.mxu0 0
        %1754 = vmatpush1.bf16.msra.mxu0 0
        %1755 = vmatprep.subr.bf16.mxu0 0
        %1756 = vmatpush1.bf16.msra.mxu0 0
        %1757 = vmatprep.subr.bf16.mxu0 0
        %1758 = vmatpush1.bf16.msra.mxu0 0
        %1759 = vmatprep.mubr.bf16.mxu0 0
        %1760 = vmatmul.mubr.bf16.gmra.mrb[0].mxu0 %v1725
        %v1761 = vpop.f32.mrb[0].mxu0
        %v1762 = vadd.f32 0.0, %v1761
        %v1763 = vpop.f32.mrb[0].mxu0
        %v1764 = vpop.f32.mrb[0].mxu0
        %v1765 = vpop.f32.mrb[0].mxu0
        %1766 = vdwg.mxu0
        %v1768 = vsel %vm1192, %v1615, 0
        %1770 = vmatprep.subr.bf16.mxu0 0
        %1771 = vmatpush1.bf16.msra.mxu0 %v1462
        %1772 = vmatprep.subr.bf16.mxu0 0
        %1773 = vmatpush1.bf16.msra.mxu0 0
        %1774 = vmatprep.subr.bf16.mxu0 0
        %1775 = vmatpush1.bf16.msra.mxu0 0
        %1776 = vmatprep.subr.bf16.mxu0 0
        %1777 = vmatpush1.bf16.msra.mxu0 0
        %1778 = vmatprep.subr.bf16.mxu0 0
        %1779 = vmatpush1.bf16.msra.mxu0 0
        %1780 = vmatprep.subr.bf16.mxu0 0
        %1781 = vmatpush1.bf16.msra.mxu0 0
        %1782 = vmatprep.subr.bf16.mxu0 0
        %1783 = vmatpush1.bf16.msra.mxu0 0
        %1784 = vmatprep.subr.bf16.mxu0 0
        %1785 = vmatpush1.bf16.msra.mxu0 0
        %1786 = vmatprep.subr.bf16.mxu0 0
        %1787 = vmatpush1.bf16.msra.mxu0 0
        %1788 = vmatprep.subr.bf16.mxu0 0
        %1789 = vmatpush1.bf16.msra.mxu0 0
        %1790 = vmatprep.subr.bf16.mxu0 0
        %1791 = vmatpush1.bf16.msra.mxu0 0
        %1792 = vmatprep.subr.bf16.mxu0 0
        %1793 = vmatpush1.bf16.msra.mxu0 0
        %1794 = vmatprep.subr.bf16.mxu0 0
        %1795 = vmatpush1.bf16.msra.mxu0 0
        %1796 = vmatprep.subr.bf16.mxu0 0
        %1797 = vmatpush1.bf16.msra.mxu0 0
        %1798 = vmatprep.subr.bf16.mxu0 0
        %1799 = vmatpush1.bf16.msra.mxu0 0
        %1800 = vmatprep.subr.bf16.mxu0 0
        %1801 = vmatpush1.bf16.msra.mxu0 0
        %1802 = vmatprep.mubr.bf16.mxu0 0
        %1803 = vmatmul.mubr.bf16.gmra.mrb[0].mxu0 %v1768
        %v1804 = vpop.f32.mrb[0].mxu0
        %v1805 = vadd.f32 %v1762, %v1804
        %v1806 = vpop.f32.mrb[0].mxu0
        %v1807 = vpop.f32.mrb[0].mxu0
        %v1808 = vpop.f32.mrb[0].mxu0
        %1809 = vdwg.mxu0
        %v1810 = vsel %vm1508, 0.0, %v1805
        %v1811 = vld [vmem:[%s849] sm:$0x1]
        %v1813 = vlaneseq
        %v1814 = vshrl.u32 %v1813, 7
        %v1815 = vsub.s32 0, %v1814
        %v1816 = vrot.slane %v1811, %v1815
        %v1818 = vadd.f32 %v1509, %v1816
        %v1819 = vadd.f32 %v1810, %v1816
        %v1820 = vadd.f32 %v1035, %v1818
        %v1821 = vadd.f32 %v1036, %v1819
        %v1822 = vld [vmem:[%s857] sm:$0x1]
        %v1823 = vld [vmem:[%s865] sm:$0x1]
        %v1824 = vsel %vm1071, %v1820, 0.0
        %1825 = vadd.xlane.f32.xlu0 %v1824
        %v1826 = vpop.xlane.xlu0 %1825
        %v1827 = vsel %vm1071, %v1821, 0.0
        %1828 = vadd.xlane.f32.xlu0 %v1827
        %v1829 = vpop.xlane.xlu0 %1828
        %v1830 = vrcp.pop 32.0
        %v1831 = vmul.f32 %v1826, %v1830
        %v1832 = vmul.f32 %v1829, %v1830
        %v1833 = vsub.f32 %v1820, %v1831
        %v1834 = vsub.f32 %v1821, %v1832
        %v1835 = vmul.f32 %v1833, %v1833
        %v1836 = vmul.f32 %v1834, %v1834
        %v1837 = vsel %vm1071, %v1835, 0.0
        %1838 = vadd.xlane.f32.xlu0 %v1837
        %v1839 = vpop.xlane.xlu0 %1838
        %v1840 = vsel %vm1071, %v1836, 0.0
        %1841 = vadd.xlane.f32.xlu0 %v1840
        %v1842 = vpop.xlane.xlu0 %1841
        %v1843 = vmul.f32 %v1839, %v1830
        %v1844 = vmul.f32 %v1842, %v1830
        %v1845 = vadd.f32 %v1843, 1e-05
        %v1846 = vadd.f32 %v1844, 1e-05
        %v1847 = vrsqrt.pop %v1845
        %v1848 = vrsqrt.pop %v1846
        %v1849 = vmul.f32 %v1833, %v1847
        %v1850 = vmul.f32 %v1834, %v1848
        %v1852 = vlaneseq
        %v1853 = vshrl.u32 %v1852, 7
        %v1854 = vsub.s32 0, %v1853
        %v1855 = vrot.slane %v1822, %v1854
        %v1857 = vmul.f32 %v1849, %v1855
        %v1858 = vmul.f32 %v1850, %v1855
        %v1860 = vlaneseq
        %v1861 = vshrl.u32 %v1860, 7
        %v1862 = vsub.s32 0, %v1861
        %v1863 = vrot.slane %v1823, %v1862
        %v1865 = vadd.f32 %v1857, %v1863
        %v1866 = vadd.f32 %v1858, %v1863
        %v1867 = vpack.c.bf16 %v1866, %v1865
        %v1868 = vld [vmem:[%s874] sm:$0xf]
        %v1869 = vld [vmem:[%s874 + $0x4] sm:$0xf]
        %v1870 = vld [vmem:[%s874 + $0x8] sm:$0xf]
        %v1871 = vld [vmem:[%s874 + $0xc] sm:$0xf]
        %v1872 = vld [vmem:[%s882] sm:$0x1]
        %v1874 = vlaneseq
        %v1875 = vshrl.u32 %v1874, 7
        %v1876 = vsub.s32 0, %v1875
        %v1877 = vrot.slane %v1872, %v1876
        %v1883 = vunpack.c.l.b16 %v1868
        %v1884 = vunpack.c.l.b16 %v1869
        %v1885 = vunpack.c.l.b16 %v1870
        %v1886 = vunpack.c.l.b16 %v1871
        %v1887 = vpack.c.b16 %v1884, %v1883
        %v1888 = vpack.c.b16 %v1886, %v1885
        %v1892 = vsel %vm1071, %v1867, 0
        %1894 = vmatprep.subr.bf16.mxu0 0
        %1895 = vmatpush1.bf16.msra.mxu0 %v1887
        %1896 = vmatprep.subr.bf16.mxu0 0
        %1897 = vmatpush1.bf16.msra.mxu0 %v1888
        %1898 = vmatprep.subr.bf16.mxu0 0
        %1899 = vmatpush1.bf16.msra.mxu0 0
        %1900 = vmatprep.subr.bf16.mxu0 0
        %1901 = vmatpush1.bf16.msra.mxu0 0
        %1902 = vmatprep.subr.bf16.mxu0 0
        %1903 = vmatpush1.bf16.msra.mxu0 0
        %1904 = vmatprep.subr.bf16.mxu0 0
        %1905 = vmatpush1.bf16.msra.mxu0 0
        %1906 = vmatprep.subr.bf16.mxu0 0
        %1907 = vmatpush1.bf16.msra.mxu0 0
        %1908 = vmatprep.subr.bf16.mxu0 0
        %1909 = vmatpush1.bf16.msra.mxu0 0
        %1910 = vmatprep.subr.bf16.mxu0 0
        %1911 = vmatpush1.bf16.msra.mxu0 0
        %1912 = vmatprep.subr.bf16.mxu0 0
        %1913 = vmatpush1.bf16.msra.mxu0 0
        %1914 = vmatprep.subr.bf16.mxu0 0
        %1915 = vmatpush1.bf16.msra.mxu0 0
        %1916 = vmatprep.subr.bf16.mxu0 0
        %1917 = vmatpush1.bf16.msra.mxu0 0
        %1918 = vmatprep.subr.bf16.mxu0 0
        %1919 = vmatpush1.bf16.msra.mxu0 0
        %1920 = vmatprep.subr.bf16.mxu0 0
        %1921 = vmatpush1.bf16.msra.mxu0 0
        %1922 = vmatprep.subr.bf16.mxu0 0
        %1923 = vmatpush1.bf16.msra.mxu0 0
        %1924 = vmatprep.subr.bf16.mxu0 0
        %1925 = vmatpush1.bf16.msra.mxu0 0
        %1926 = vmatprep.mubr.bf16.mxu0 0
        %1927 = vmatmul.mubr.bf16.gmra.mrb[0].mxu0 %v1892
        %v1928 = vpop.f32.mrb[0].mxu0
        %v1929 = vadd.f32 %v1877, %v1928
        %v1930 = vpop.f32.mrb[0].mxu0
        %v1931 = vpop.f32.mrb[0].mxu0
        %v1932 = vadd.f32 %v1877, %v1931
        %v1933 = vpop.f32.mrb[0].mxu0
        %1934 = vdwg.mxu0
        %v1935 = vmax.f32 %v1929, 0.0
        %v1936 = vmax.f32 %v1932, 0.0
        %v1937 = vpack.c.bf16 %v1936, %v1935
        %v1938 = vld [vmem:[%s891] sm:$0xf]
        %v1939 = vld [vmem:[%s891 + $0x4] sm:$0xf]
        %v1940 = vld [vmem:[%s891 + $0x8] sm:$0xf]
        %v1941 = vld [vmem:[%s891 + $0xc] sm:$0xf]
        %v1942 = vld [vmem:[%s891 + $0x10] sm:$0xf]
        %v1943 = vld [vmem:[%s891 + $0x14] sm:$0xf]
        %v1944 = vld [vmem:[%s891 + $0x18] sm:$0xf]
        %v1945 = vld [vmem:[%s891 + $0x1c] sm:$0xf]
        %v1946 = vld [vmem:[%s899] sm:$0x1]
        %v1948 = vlaneseq
        %v1949 = vshrl.u32 %v1948, 7
        %v1950 = vsub.s32 0, %v1949
        %v1951 = vrot.slane %v1946, %v1950
        %v1961 = vunpack.c.l.b16 %v1938
        %v1962 = vunpack.c.l.b16 %v1939
        %v1963 = vunpack.c.l.b16 %v1940
        %v1964 = vunpack.c.l.b16 %v1941
        %v1965 = vunpack.c.l.b16 %v1942
        %v1966 = vunpack.c.l.b16 %v1943
        %v1967 = vunpack.c.l.b16 %v1944
        %v1968 = vunpack.c.l.b16 %v1945
        %v1969 = vpack.c.b16 %v1962, %v1961
        %v1970 = vpack.c.b16 %v1964, %v1963
        %v1971 = vpack.c.b16 %v1966, %v1965
        %v1972 = vpack.c.b16 %v1968, %v1967
        %vm1977 = vcmask 523264
        %v1979 = vsel %vm1977, %v1937, 0
        %1981 = vmatprep.subr.bf16.mxu0 0
        %1982 = vmatpush1.bf16.msra.mxu0 %v1969
        %1983 = vmatprep.subr.bf16.mxu0 0
        %1984 = vmatpush1.bf16.msra.mxu0 %v1970
        %1985 = vmatprep.subr.bf16.mxu0 0
        %1986 = vmatpush1.bf16.msra.mxu0 %v1971
        %1987 = vmatprep.subr.bf16.mxu0 0
        %1988 = vmatpush1.bf16.msra.mxu0 %v1972
        %1989 = vmatprep.subr.bf16.mxu0 0
        %1990 = vmatpush1.bf16.msra.mxu0 0
        %1991 = vmatprep.subr.bf16.mxu0 0
        %1992 = vmatpush1.bf16.msra.mxu0 0
        %1993 = vmatprep.subr.bf16.mxu0 0
        %1994 = vmatpush1.bf16.msra.mxu0 0
        %1995 = vmatprep.subr.bf16.mxu0 0
        %1996 = vmatpush1.bf16.msra.mxu0 0
        %1997 = vmatprep.subr.bf16.mxu0 0
        %1998 = vmatpush1.bf16.msra.mxu0 0
        %1999 = vmatprep.subr.bf16.mxu0 0
        %2000 = vmatpush1.bf16.msra.mxu0 0
        %2001 = vmatprep.subr.bf16.mxu0 0
        %2002 = vmatpush1.bf16.msra.mxu0 0
        %2003 = vmatprep.subr.bf16.mxu0 0
        %2004 = vmatpush1.bf16.msra.mxu0 0
        %2005 = vmatprep.subr.bf16.mxu0 0
        %2006 = vmatpush1.bf16.msra.mxu0 0
        %2007 = vmatprep.subr.bf16.mxu0 0
        %2008 = vmatpush1.bf16.msra.mxu0 0
        %2009 = vmatprep.subr.bf16.mxu0 0
        %2010 = vmatpush1.bf16.msra.mxu0 0
        %2011 = vmatprep.subr.bf16.mxu0 0
        %2012 = vmatpush1.bf16.msra.mxu0 0
        %2013 = vmatprep.mubr.bf16.mxu0 0
        %2014 = vmatmul.mubr.bf16.gmra.mrb[0].mxu0 %v1979
        %v2015 = vpop.f32.mrb[0].mxu0
        %v2016 = vadd.f32 %v1951, %v2015
        %v2017 = vpop.f32.mrb[0].mxu0
        %v2018 = vpop.f32.mrb[0].mxu0
        %v2019 = vadd.f32 %v1951, %v2018
        %v2020 = vpop.f32.mrb[0].mxu0
        %2021 = vdwg.mxu0
        %v2022 = vadd.f32 %v1865, %v2016
        %v2023 = vadd.f32 %v1866, %v2019
        %v2024 = vld [vmem:[%s907] sm:$0x1]
        %v2025 = vld [vmem:[%s915] sm:$0x1]
        %v2026 = vsel %vm1071, %v2022, 0.0
        %2027 = vadd.xlane.f32.xlu0 %v2026
        %v2028 = vpop.xlane.xlu0 %2027
        %v2029 = vsel %vm1071, %v2023, 0.0
        %2030 = vadd.xlane.f32.xlu0 %v2029
        %v2031 = vpop.xlane.xlu0 %2030
        %v2032 = vmul.f32 %v2028, %v1830
        %v2033 = vmul.f32 %v2031, %v1830
        %v2034 = vsub.f32 %v2022, %v2032
        %v2035 = vsub.f32 %v2023, %v2033
        %v2036 = vmul.f32 %v2034, %v2034
        %v2037 = vmul.f32 %v2035, %v2035
        %v2038 = vsel %vm1071, %v2036, 0.0
        %2039 = vadd.xlane.f32.xlu0 %v2038
        %v2040 = vpop.xlane.xlu0 %2039
        %v2041 = vsel %vm1071, %v2037, 0.0
        %2042 = vadd.xlane.f32.xlu0 %v2041
        %v2043 = vpop.xlane.xlu0 %2042
        %v2044 = vmul.f32 %v2040, %v1830
        %v2045 = vmul.f32 %v2043, %v1830
        %v2046 = vadd.f32 %v2044, 1e-05
        %v2047 = vadd.f32 %v2045, 1e-05
        %v2048 = vrsqrt.pop %v2046
        %v2049 = vrsqrt.pop %v2047
        %v2050 = vmul.f32 %v2034, %v2048
        %v2051 = vmul.f32 %v2035, %v2049
        %v2053 = vlaneseq
        %v2054 = vshrl.u32 %v2053, 7
        %v2055 = vsub.s32 0, %v2054
        %v2056 = vrot.slane %v2024, %v2055
        %v2058 = vmul.f32 %v2050, %v2056
        %v2059 = vmul.f32 %v2051, %v2056
        %v2061 = vlaneseq
        %v2062 = vshrl.u32 %v2061, 7
        %v2063 = vsub.s32 0, %v2062
        %v2064 = vrot.slane %v2025, %v2063
        %v2066 = vadd.f32 %v2058, %v2064
        %v2067 = vadd.f32 %v2059, %v2064
        %2068 = vst.msk [vmem:[#allocation2] sm:$0xff] %vm1071, %v2066
        %2069 = vst.msk [vmem:[#allocation2 + $0x8] sm:$0xff] %vm1071, %v2067
        %p2070 = scmp.eq.s32.totalorder %s35, 1
        // Predicated region
        $region153: #{tpu_custom_call.1} parent=83 // pred_check
          %p2071 = pneg %p2070
        $region154: #{tpu_custom_call.1} parent=83 // pred_check_branch
          %2073 = sbr.rel (%p2071) target = $region156
        $region155: #{tpu_custom_call.1} parent=83 // pred_region
          %2074 = vst.msk [vmem:[#allocation23] sm:$0xff] %vm1071, %v2066
          %2075 = vst.msk [vmem:[#allocation23 + $0x8] sm:$0xff] %vm1071, %v2067
        $region156: #{tpu_custom_call.1} parent=83 // pred_fallthru
          _
        // Predicated region
        $region157: #{tpu_custom_call.1} parent=83 // pred_check
          %p2076 = pneg %p476
        $region158: #{tpu_custom_call.1} parent=83 // pred_check_branch
          %2078 = sbr.rel (%p2076) target = $region160
        $region159: #{tpu_custom_call.1} parent=83 // pred_region
          %s2079 = smul.u32 2, %s34
          %s2081 = ssub.s32 256, 256
          %2082 = vsyncadd [#allocation6], %s2081
          %s2083 = smul.addr %s2079, 128
          %s2084 = scalar_lea.hbm %s16, %s2083
          %s2085 = sshll.u32 [#allocation23], 4
          %s2086 = int_to_ptr.vmem [resolvable:$true] %s2085
          %2091 = dma.vmem_to_hbm [thread:$0]  %s2086, 256, %s2084, [#allocation6], 128, 128, 8
        $region160: #{tpu_custom_call.1} parent=83 // pred_fallthru
          _
        // Predicated region
        $region161: #{tpu_custom_call.1} parent=83 // pred_check
          %p2092 = pneg %p476
        $region162: #{tpu_custom_call.1} parent=83 // pred_check_branch
          %2094 = sbr.rel (%p2092) target = $region164
        $region163: #{tpu_custom_call.1} parent=83 // pred_region
          %2095 = dma.done [#allocation6], 256
        $region164: #{tpu_custom_call.1} parent=83 // pred_fallthru
          _
      $region84: #{tpu_custom_call.1} parent=5 // pred_fallthru
        _
      %p2096 = scmp.le.s32.totalorder 2, %s25
      // Predicated region
      $region165: #{tpu_custom_call.1} parent=5 // pred_check
        %p2097 = pneg %p2096
      $region166: #{tpu_custom_call.1} parent=5 // pred_check_branch
        %2099 = sbr.rel (%p2097) target = $region168
      $region167: #{tpu_custom_call.1} parent=5 // pred_region
        %s2100 = ssub.s32 %s25, 2
      $region168: #{tpu_custom_call.1} parent=5 // pred_fallthru
        _
    $region6: #{tpu_custom_call.1} parent=1 // loop_footer
      %s29 = sadd.s32 1, %s25
    $region7: #{tpu_custom_call.1} parent=1 // loop_footer_branch
      %24 = sbr.rel target = $region3
    $region8: #{tpu_custom_call.1} parent=1 // loop_exit
      _
    %2101 = vsyncpa [#allocation5], 1
    %s2102 = scalar_lea.sflag [#allocation5], 1
    %2103 = vsyncpa %s2102, 1
    %2104 = vsyncpa [#allocation8], 1
    %2105 = vsyncpa [#allocation6], 1
    %s2106 = scalar_lea.sflag [#allocation6], 1
    %2107 = vsyncpa %s2106, 1

</llo_original>
